<compile_context>
chip_gen: v5e
topology: v5e:2x2
jax: 0.10.0
libtpu: 0.0.40
codegen_flags: <defaults>
</compile_context>

<pallas_src>
from functools import partial

import numpy as np
import jax
import jax.numpy as jnp
from jax.experimental import pallas as pl
from jax.experimental.pallas import tpu as pltpu

# ---------------- model config (small, synthetic) ----------------
VOCAB = 128
EMBED = 32
HIDDEN = 32
NUM_LAYERS = 2                # kernel wavefront is written for exactly 2
B = 4
BP = 8                        # batch padded to the f32 sublane count
T_ATTR = 2
T_CAP = 6
T_TOTAL = T_ATTR + T_CAP      # 8
NROWS = T_TOTAL * BP          # 64 ; row n = t * BP + b (time-major, flat)

assert NUM_LAYERS == 2


# ---------------- fused Pallas kernel ----------------
def _decoder_fused_kernel(tok_ref, feat_ref, table_ref, b2_ref,
                          wih0_ref, wblk_ref, b0_ref, b1_ref,
                          wout_ref, bout_ref, out_ref, x_buf):
    H = HIDDEN
    V = VOCAB
    E = EMBED

    # ---- embedding + linear2 fused: one one-hot matmul (NROWS,V)@(V,2E) ----
    ids = tok_ref[...]                                            # (NROWS, 1)
    vocab_iota = jax.lax.broadcasted_iota(jnp.int32, (NROWS, V), 1)
    onehot = (ids == vocab_iota).astype(jnp.float32)              # (NROWS, V)
    emb2 = jnp.dot(onehot, table_ref[...],
                   preferred_element_type=jnp.float32)            # (NROWS, 2E)
    emb_all = emb2[:, :E]                                         # embedding
    attr_lin = emb2[:, E:]                                        # emb @ W2

    # ---- in-kernel feature injection (sublane tile) + attr/caption select --
    feat_tiled = jnp.tile(feat_ref[...], (T_TOTAL, 1))            # (NROWS, E)
    row = jax.lax.broadcasted_iota(jnp.int32, (NROWS, E), 0)
    x0 = jnp.where(row < T_ATTR * BP,
                   attr_lin + b2_ref[...],
                   emb_all + feat_tiled)                          # (NROWS, E)

    # ---- layer-0 input projection hoisted out of the recurrence ----
    gx0 = (jnp.dot(x0, wih0_ref[...], preferred_element_type=jnp.float32)
           + b0_ref[...])                                         # (NROWS, 4H)
    b1 = b1_ref[...]                                              # (1, 4H)

    # gates are pre-scaled (i/f/o columns by 0.5) so a single tanh suffices:
    # sigmoid(z) = 0.5 * (tanh(z / 2) + 1)
    def cell(gates, c):
        th = jnp.tanh(gates)                                      # (BP, 4H)
        i_g = 0.5 * (th[:, 0 * H:1 * H] + 1.0)
        f_g = 0.5 * (th[:, 1 * H:2 * H] + 1.0)
        g_g = th[:, 2 * H:3 * H]
        o_g = 0.5 * (th[:, 3 * H:4 * H] + 1.0)
        c_new = f_g * c + i_g * g_g
        h_new = o_g * jnp.tanh(c_new)
        return h_new, c_new

    # ---- wavefront over the two layers (statically unrolled) ----
    # step s: layer-0 computes time s, layer-1 computes time s-1; both read
    # h0_{s-1}, so one block matmul [h0|h1] @ [[Whh0, Wih1],[0, Whh1]] feeds
    # both cells.
    zeros = jnp.zeros((BP, H), jnp.float32)
    h0, c0 = zeros, zeros
    h1, c1 = zeros, zeros
    h0, c0 = cell(gx0[0:BP, :], c0)            # step 0: layer-0 only, h=c=0
    for s in range(1, T_TOTAL + 1):
        hcat = jnp.concatenate([h0, h1], axis=1)                  # (BP, 2H)
        gblk = jnp.dot(hcat, wblk_ref[...],
                       preferred_element_type=jnp.float32)        # (BP, 8H)
        gates1 = gblk[:, 4 * H:] + b1
        h1, c1 = cell(gates1, c1)
        x_buf[pl.ds((s - 1) * BP, BP), :] = h1                    # layer-1 out
        if s < T_TOTAL:
            gates0 = gx0[s * BP:(s + 1) * BP, :] + gblk[:, :4 * H]
            h0, c0 = cell(gates0, c0)

    # ---- final linear + log_softmax over the dense, lane-dense block ----
    logits = (jnp.dot(x_buf[...], wout_ref[...],
                      preferred_element_type=jnp.float32)
              + bout_ref[...])                                    # (NROWS, V)
    m = jnp.max(logits, axis=1, keepdims=True)
    sft = logits - m
    lse = jnp.log(jnp.sum(jnp.exp(sft), axis=1, keepdims=True))
    out_ref[...] = (sft - lse).astype(out_ref.dtype)


# ---------------- jitted forward (layout glue + weight prep + kernel) ------
@jax.jit
def _forward_jit(params, captions, feature, attributes, flat_idx):
    H = HIDDEN

    # Gate pre-scaling: i/f/o columns by 0.5 (PyTorch gate order i, f, g, o).
    gate_scale = jnp.concatenate([
        jnp.full((2 * H,), 0.5, jnp.float32),
        jnp.ones((H,), jnp.float32),
        jnp.full((H,), 0.5, jnp.float32)])
    wih0 = params["wih"][0] * gate_scale
    whh0 = params["whh"][0] * gate_scale
    b0 = params["blstm"][0] * gate_scale
    wih1 = params["wih"][1] * gate_scale
    whh1 = params["whh"][1] * gate_scale
    b1 = params["blstm"][1] * gate_scale

    # Block weight for the wavefront step: [h0 | h1] @ [[Whh0, Wih1],[0, Whh1]]
    wblk = jnp.concatenate([
        jnp.concatenate([whh0, wih1], axis=1),
        jnp.concatenate([jnp.zeros((H, 4 * H), jnp.float32), whh1], axis=1)],
        axis=0)                                                   # (2H, 8H)

    # Embedding table fused with linear2 (no bias):  (V, 2E) = [emb | emb@W2]
    table = jnp.concatenate(
        [params["embedding"], params["embedding"] @ params["w2"]], axis=1)

    # Token layout: time-major, batch padded to BP, flattened n = t*BP + b.
    tok = jnp.concatenate([attributes.T, captions.T], axis=0)     # (T, B)
    tok = jnp.pad(tok, ((0, 0), (0, BP - B)))                     # (T, BP)
    tok_flat = tok.reshape(NROWS, 1).astype(jnp.int32)

    feat_p = jnp.pad(feature, ((0, BP - B), (0, 0)))              # (BP, E)

    vmem = pl.BlockSpec(memory_space=pltpu.MemorySpace.VMEM)
    out_dense = pl.pallas_call(
        _decoder_fused_kernel,
        out_shape=jax.ShapeDtypeStruct((NROWS, VOCAB), jnp.float32),
        in_specs=[vmem] * 10,
        out_specs=vmem,
        scratch_shapes=[pltpu.VMEM((NROWS, HIDDEN), jnp.float32)],
    )(tok_flat, feat_p, table, params["b2"], wih0, wblk, b0, b1,
      params["w_out"], params["b_out"])

    # pack_padded_sequence row order: gather the valid (t, b) rows.
    return out_dense[flat_idx]


def decoder_forward(params, captions, feature, lengths, attributes):
    # `lengths` must be a static host value (pack order is a Python loop);
    # only the resulting index array crosses the jit boundary.
    lengths_np = np.asarray(lengths)
    flat_idx = np.asarray(
        [t * BP + b for t in range(T_TOTAL) for b in range(B)
         if lengths_np[b] > t], dtype=np.int32)
    # TODO(synk): for serving batches > BP, add a leading "parallel" grid axis
    # over batch groups so v7x's second TensorCore is used.
    return _forward_jit(params, captions, feature, attributes,
                        jnp.asarray(flat_idx))


# ---------------- pure-JAX reference ----------------
def reference_forward(params, captions, feature, lengths, attributes):
    cap_emb = params["embedding"][captions]
    attr_emb = params["embedding"][attributes]
    attr_lin = attr_emb @ params["w2"] + params["b2"]
    injected = cap_emb + feature[:, None, :]
    inputs = jnp.concatenate([attr_lin, injected], axis=1)   # (B, T, E)
    x = jnp.transpose(inputs, (1, 0, 2))                     # (T, B, E)
    H = HIDDEN
    for layer in range(NUM_LAYERS):
        wih = params["wih"][layer]
        whh = params["whh"][layer]
        b = params["blstm"][layer]

        def step(carry, xt, wih=wih, whh=whh, b=b):
            h, c = carry
            gates = xt @ wih + h @ whh + b
            i = jax.nn.sigmoid(gates[:, :H])
            f = jax.nn.sigmoid(gates[:, H:2 * H])
            g = jnp.tanh(gates[:, 2 * H:3 * H])
            o = jax.nn.sigmoid(gates[:, 3 * H:])
            c = f * c + i * g
            h = o * jnp.tanh(c)
            return (h, c), h

        init = (jnp.zeros((B, H), jnp.float32),
                jnp.zeros((B, H), jnp.float32))
        _, x = jax.lax.scan(step, init, x)

    lengths_np = np.asarray(lengths)
    t_idx, b_idx = [], []
    for t in range(T_TOTAL):
        for b_ in range(B):
            if lengths_np[b_] > t:
                t_idx.append(t)
                b_idx.append(b_)
    packed_h = x[np.asarray(t_idx), np.asarray(b_idx)]
    logits = packed_h @ params["w_out"] + params["b_out"]
    return jax.nn.log_softmax(logits, axis=1)


# ---------------- parameter init ----------------
def init_params(key):
    ks = jax.random.split(key, 16)
    s = 0.1
    params = {
        "embedding": jax.random.normal(ks[0], (VOCAB, EMBED), jnp.float32) * s,
        "w2": jax.random.normal(ks[1], (HIDDEN, HIDDEN), jnp.float32) * s,
        "b2": jax.random.normal(ks[2], (1, HIDDEN), jnp.float32) * s,
        "w_out": jax.random.normal(ks[3], (HIDDEN, VOCAB), jnp.float32) * s,
        "b_out": jax.random.normal(ks[4], (1, VOCAB), jnp.float32) * s,
    }
    wih, whh, blstm = [], [], []
    for layer in range(NUM_LAYERS):
        din = EMBED if layer == 0 else HIDDEN
        wih.append(jax.random.normal(
            ks[5 + 3 * layer], (din, 4 * HIDDEN), jnp.float32) * s)
        whh.append(jax.random.normal(
            ks[6 + 3 * layer], (HIDDEN, 4 * HIDDEN), jnp.float32) * s)
        blstm.append(jax.random.normal(
            ks[7 + 3 * layer], (1, 4 * HIDDEN), jnp.float32) * s)
    params["wih"] = jnp.stack(wih)        # (L, E, 4H)  (E == H)
    params["whh"] = jnp.stack(whh)        # (L, H, 4H)
    params["blstm"] = jnp.stack(blstm)    # (L, 1, 4H)
    return params


if __name__ == "__main__":
    key = jax.random.PRNGKey(0)
    pkey, ckey, akey, fkey = jax.random.split(key, 4)
    params = init_params(pkey)

    captions = jax.random.randint(ckey, (B, T_CAP), 0, VOCAB, dtype=jnp.int32)
    attributes = jax.random.randint(akey, (B, T_ATTR), 0, VOCAB,
                                    dtype=jnp.int32)
    feature = jax.random.normal(fkey, (B, EMBED), jnp.float32)
    # lengths of the concatenated (attr + caption) sequence, sorted descending
    # as required by pack_padded_sequence(enforce_sorted=True).
    lengths = np.array([8, 6, 5, 3], dtype=np.int32)

    out = decoder_forward(params, captions, feature, lengths, attributes)
    out = jax.block_until_ready(out)

    ref = reference_forward(params, captions, feature, lengths, attributes)
    assert out.shape == (int(lengths.sum()), VOCAB)
    np.testing.assert_allclose(np.asarray(out), np.asarray(ref),
                               atol=5e-2, rtol=5e-2)
    print("KERNEL_OK")
</pallas_src>

<mosaic_0001>
module attributes {stable_mosaic.version = 11 : i64} {
  func.func @_decoder_fused_kernel(%arg0: memref<64x1xi32, #tpu.memory_space<vmem>>, %arg1: memref<8x32xf32, #tpu.memory_space<vmem>>, %arg2: memref<128x64xf32, #tpu.memory_space<vmem>>, %arg3: memref<1x32xf32, #tpu.memory_space<vmem>>, %arg4: memref<32x128xf32, #tpu.memory_space<vmem>>, %arg5: memref<64x256xf32, #tpu.memory_space<vmem>>, %arg6: memref<1x128xf32, #tpu.memory_space<vmem>>, %arg7: memref<1x128xf32, #tpu.memory_space<vmem>>, %arg8: memref<32x128xf32, #tpu.memory_space<vmem>>, %arg9: memref<1x128xf32, #tpu.memory_space<vmem>>, %arg10: memref<64x128xf32, #tpu.memory_space<vmem>>, %arg11: memref<64x32xf32, #tpu.memory_space<vmem>>) attributes {dimension_semantics = [], scalar_prefetch = 0 : i64, scratch_operands = 1 : i64, tpu.core_type = #tpu.core_type<tc>} {
    %c0 = arith.constant 0 : index
    %c0_0 = arith.constant 0 : index
    %0 = vector.load %arg0[%c0, %c0_0] : memref<64x1xi32, #tpu.memory_space<vmem>>, vector<64x1xi32>
    %1 = tpu.iota {dimensions = array<i32: 1>} : vector<64x128xi32>
    %2 = vector.broadcast %0 : vector<64x1xi32> to vector<64x128xi32>
    %3 = arith.cmpi eq, %2, %1 : vector<64x128xi32>
    %4 = arith.extui %3 : vector<64x128xi1> to vector<64x128xi32>
    %5 = arith.sitofp %4 : vector<64x128xi32> to vector<64x128xf32>
    %c0_1 = arith.constant 0 : index
    %c0_2 = arith.constant 0 : index
    %6 = vector.load %arg2[%c0_1, %c0_2] : memref<128x64xf32, #tpu.memory_space<vmem>>, vector<128x64xf32>
    %cst = arith.constant dense<0.000000e+00> : vector<64x64xf32>
    %7 = tpu.matmul %5, %6, %cst {dimension_numbers = #tpu.dot_dimension_numbers<[1], [0], [0], [1], [0, 0, 1, 1], [], []>} : vector<64x128xf32>, vector<128x64xf32>, vector<64x64xf32> -> vector<64x64xf32>
    %8 = vector.extract_strided_slice %7 {offsets = [0, 0], sizes = [64, 32], strides = [1, 1]} : vector<64x64xf32> to vector<64x32xf32>
    %9 = vector.extract_strided_slice %7 {offsets = [0, 32], sizes = [64, 32], strides = [1, 1]} : vector<64x64xf32> to vector<64x32xf32>
    %c0_3 = arith.constant 0 : index
    %c0_4 = arith.constant 0 : index
    %10 = vector.load %arg1[%c0_3, %c0_4] : memref<8x32xf32, #tpu.memory_space<vmem>>, vector<8x32xf32>
    %11 = tpu.concatenate %10, %10, %10, %10, %10, %10, %10, %10 in 0 : vector<8x32xf32>, vector<8x32xf32>, vector<8x32xf32>, vector<8x32xf32>, vector<8x32xf32>, vector<8x32xf32>, vector<8x32xf32>, vector<8x32xf32> -> vector<64x32xf32>
    %12 = tpu.iota {dimensions = array<i32: 0>} : vector<64x32xi32>
    %c16_i32 = arith.constant 16 : i32
    %13 = vector.broadcast %c16_i32 : i32 to vector<64x32xi32>
    %14 = arith.cmpi slt, %12, %13 : vector<64x32xi32>
    %c0_5 = arith.constant 0 : index
    %c0_6 = arith.constant 0 : index
    %15 = vector.load %arg3[%c0_5, %c0_6] : memref<1x32xf32, #tpu.memory_space<vmem>>, vector<1x32xf32>
    %16 = vector.broadcast %15 : vector<1x32xf32> to vector<64x32xf32>
    %17 = arith.addf %9, %16 : vector<64x32xf32>
    %18 = arith.addf %8, %11 : vector<64x32xf32>
    %19 = arith.select %14, %17, %18 : vector<64x32xi1>, vector<64x32xf32>
    %c0_7 = arith.constant 0 : index
    %c0_8 = arith.constant 0 : index
    %20 = vector.load %arg4[%c0_7, %c0_8] : memref<32x128xf32, #tpu.memory_space<vmem>>, vector<32x128xf32>
    %cst_9 = arith.constant dense<0.000000e+00> : vector<64x128xf32>
    %21 = tpu.matmul %19, %20, %cst_9 {dimension_numbers = #tpu.dot_dimension_numbers<[1], [0], [0], [1], [0, 0, 1, 1], [], []>} : vector<64x32xf32>, vector<32x128xf32>, vector<64x128xf32> -> vector<64x128xf32>
    %c0_10 = arith.constant 0 : index
    %c0_11 = arith.constant 0 : index
    %22 = vector.load %arg6[%c0_10, %c0_11] : memref<1x128xf32, #tpu.memory_space<vmem>>, vector<1x128xf32>
    %23 = vector.broadcast %22 : vector<1x128xf32> to vector<64x128xf32>
    %24 = arith.addf %21, %23 : vector<64x128xf32>
    %c0_12 = arith.constant 0 : index
    %c0_13 = arith.constant 0 : index
    %25 = vector.load %arg7[%c0_12, %c0_13] : memref<1x128xf32, #tpu.memory_space<vmem>>, vector<1x128xf32>
    %cst_14 = arith.constant 0.000000e+00 : f32
    %26 = vector.broadcast %cst_14 : f32 to vector<8x32xf32>
    %27 = vector.extract_strided_slice %24 {offsets = [0, 0], sizes = [8, 128], strides = [1, 1]} : vector<64x128xf32> to vector<8x128xf32>
    %28 = math.tanh %27 : vector<8x128xf32>
    %29 = vector.extract_strided_slice %28 {offsets = [0, 0], sizes = [8, 32], strides = [1, 1]} : vector<8x128xf32> to vector<8x32xf32>
    %cst_15 = arith.constant 1.000000e+00 : f32
    %30 = vector.broadcast %cst_15 : f32 to vector<8x32xf32>
    %31 = arith.addf %29, %30 : vector<8x32xf32>
    %cst_16 = arith.constant 5.000000e-01 : f32
    %32 = vector.broadcast %cst_16 : f32 to vector<8x32xf32>
    %33 = arith.mulf %32, %31 : vector<8x32xf32>
    %34 = vector.extract_strided_slice %28 {offsets = [0, 32], sizes = [8, 32], strides = [1, 1]} : vector<8x128xf32> to vector<8x32xf32>
    %cst_17 = arith.constant 1.000000e+00 : f32
    %35 = vector.broadcast %cst_17 : f32 to vector<8x32xf32>
    %36 = arith.addf %34, %35 : vector<8x32xf32>
    %cst_18 = arith.constant 5.000000e-01 : f32
    %37 = vector.broadcast %cst_18 : f32 to vector<8x32xf32>
    %38 = arith.mulf %37, %36 : vector<8x32xf32>
    %39 = vector.extract_strided_slice %28 {offsets = [0, 64], sizes = [8, 32], strides = [1, 1]} : vector<8x128xf32> to vector<8x32xf32>
    %40 = vector.extract_strided_slice %28 {offsets = [0, 96], sizes = [8, 32], strides = [1, 1]} : vector<8x128xf32> to vector<8x32xf32>
    %cst_19 = arith.constant 1.000000e+00 : f32
    %41 = vector.broadcast %cst_19 : f32 to vector<8x32xf32>
    %42 = arith.addf %40, %41 : vector<8x32xf32>
    %cst_20 = arith.constant 5.000000e-01 : f32
    %43 = vector.broadcast %cst_20 : f32 to vector<8x32xf32>
    %44 = arith.mulf %43, %42 : vector<8x32xf32>
    %45 = arith.mulf %38, %26 : vector<8x32xf32>
    %46 = arith.mulf %33, %39 : vector<8x32xf32>
    %47 = arith.addf %45, %46 : vector<8x32xf32>
    %48 = math.tanh %47 : vector<8x32xf32>
    %49 = arith.mulf %44, %48 : vector<8x32xf32>
    %50 = tpu.concatenate %49, %26 in 1 : vector<8x32xf32>, vector<8x32xf32> -> vector<8x64xf32>
    %c0_21 = arith.constant 0 : index
    %c0_22 = arith.constant 0 : index
    %51 = vector.load %arg5[%c0_21, %c0_22] : memref<64x256xf32, #tpu.memory_space<vmem>>, vector<64x256xf32>
    %cst_23 = arith.constant dense<0.000000e+00> : vector<8x256xf32>
    %52 = tpu.matmul %50, %51, %cst_23 {dimension_numbers = #tpu.dot_dimension_numbers<[1], [0], [0], [1], [0, 0, 1, 1], [], []>} : vector<8x64xf32>, vector<64x256xf32>, vector<8x256xf32> -> vector<8x256xf32>
    %53 = vector.extract_strided_slice %52 {offsets = [0, 128], sizes = [8, 128], strides = [1, 1]} : vector<8x256xf32> to vector<8x128xf32>
    %54 = vector.broadcast %25 : vector<1x128xf32> to vector<8x128xf32>
    %55 = arith.addf %53, %54 : vector<8x128xf32>
    %56 = math.tanh %55 : vector<8x128xf32>
    %57 = vector.extract_strided_slice %56 {offsets = [0, 0], sizes = [8, 32], strides = [1, 1]} : vector<8x128xf32> to vector<8x32xf32>
    %cst_24 = arith.constant 1.000000e+00 : f32
    %58 = vector.broadcast %cst_24 : f32 to vector<8x32xf32>
    %59 = arith.addf %57, %58 : vector<8x32xf32>
    %cst_25 = arith.constant 5.000000e-01 : f32
    %60 = vector.broadcast %cst_25 : f32 to vector<8x32xf32>
    %61 = arith.mulf %60, %59 : vector<8x32xf32>
    %62 = vector.extract_strided_slice %56 {offsets = [0, 32], sizes = [8, 32], strides = [1, 1]} : vector<8x128xf32> to vector<8x32xf32>
    %cst_26 = arith.constant 1.000000e+00 : f32
    %63 = vector.broadcast %cst_26 : f32 to vector<8x32xf32>
    %64 = arith.addf %62, %63 : vector<8x32xf32>
    %cst_27 = arith.constant 5.000000e-01 : f32
    %65 = vector.broadcast %cst_27 : f32 to vector<8x32xf32>
    %66 = arith.mulf %65, %64 : vector<8x32xf32>
    %67 = vector.extract_strided_slice %56 {offsets = [0, 64], sizes = [8, 32], strides = [1, 1]} : vector<8x128xf32> to vector<8x32xf32>
    %68 = vector.extract_strided_slice %56 {offsets = [0, 96], sizes = [8, 32], strides = [1, 1]} : vector<8x128xf32> to vector<8x32xf32>
    %cst_28 = arith.constant 1.000000e+00 : f32
    %69 = vector.broadcast %cst_28 : f32 to vector<8x32xf32>
    %70 = arith.addf %68, %69 : vector<8x32xf32>
    %cst_29 = arith.constant 5.000000e-01 : f32
    %71 = vector.broadcast %cst_29 : f32 to vector<8x32xf32>
    %72 = arith.mulf %71, %70 : vector<8x32xf32>
    %73 = arith.mulf %66, %26 : vector<8x32xf32>
    %74 = arith.mulf %61, %67 : vector<8x32xf32>
    %75 = arith.addf %73, %74 : vector<8x32xf32>
    %76 = math.tanh %75 : vector<8x32xf32>
    %77 = arith.mulf %72, %76 : vector<8x32xf32>
    %c0_30 = arith.constant 0 : index
    %c0_31 = arith.constant 0 : index
    %78 = vector.load %arg11[%c0_30, %c0_31] : memref<64x32xf32, #tpu.memory_space<vmem>>, vector<8x32xf32>
    tpu.vector_store %arg11[%c0_30, %c0_31], %77 {strides = array<i32>} : memref<64x32xf32, #tpu.memory_space<vmem>>, vector<8x32xf32>,
    %79 = vector.extract_strided_slice %24 {offsets = [8, 0], sizes = [8, 128], strides = [1, 1]} : vector<64x128xf32> to vector<8x128xf32>
    %80 = vector.extract_strided_slice %52 {offsets = [0, 0], sizes = [8, 128], strides = [1, 1]} : vector<8x256xf32> to vector<8x128xf32>
    %81 = arith.addf %79, %80 : vector<8x128xf32>
    %82 = math.tanh %81 : vector<8x128xf32>
    %83 = vector.extract_strided_slice %82 {offsets = [0, 0], sizes = [8, 32], strides = [1, 1]} : vector<8x128xf32> to vector<8x32xf32>
    %cst_32 = arith.constant 1.000000e+00 : f32
    %84 = vector.broadcast %cst_32 : f32 to vector<8x32xf32>
    %85 = arith.addf %83, %84 : vector<8x32xf32>
    %cst_33 = arith.constant 5.000000e-01 : f32
    %86 = vector.broadcast %cst_33 : f32 to vector<8x32xf32>
    %87 = arith.mulf %86, %85 : vector<8x32xf32>
    %88 = vector.extract_strided_slice %82 {offsets = [0, 32], sizes = [8, 32], strides = [1, 1]} : vector<8x128xf32> to vector<8x32xf32>
    %cst_34 = arith.constant 1.000000e+00 : f32
    %89 = vector.broadcast %cst_34 : f32 to vector<8x32xf32>
    %90 = arith.addf %88, %89 : vector<8x32xf32>
    %cst_35 = arith.constant 5.000000e-01 : f32
    %91 = vector.broadcast %cst_35 : f32 to vector<8x32xf32>
    %92 = arith.mulf %91, %90 : vector<8x32xf32>
    %93 = vector.extract_strided_slice %82 {offsets = [0, 64], sizes = [8, 32], strides = [1, 1]} : vector<8x128xf32> to vector<8x32xf32>
    %94 = vector.extract_strided_slice %82 {offsets = [0, 96], sizes = [8, 32], strides = [1, 1]} : vector<8x128xf32> to vector<8x32xf32>
    %cst_36 = arith.constant 1.000000e+00 : f32
    %95 = vector.broadcast %cst_36 : f32 to vector<8x32xf32>
    %96 = arith.addf %94, %95 : vector<8x32xf32>
    %cst_37 = arith.constant 5.000000e-01 : f32
    %97 = vector.broadcast %cst_37 : f32 to vector<8x32xf32>
    %98 = arith.mulf %97, %96 : vector<8x32xf32>
    %99 = arith.mulf %92, %47 : vector<8x32xf32>
    %100 = arith.mulf %87, %93 : vector<8x32xf32>
    %101 = arith.addf %99, %100 : vector<8x32xf32>
    %102 = math.tanh %101 : vector<8x32xf32>
    %103 = arith.mulf %98, %102 : vector<8x32xf32>
    %104 = tpu.concatenate %103, %77 in 1 : vector<8x32xf32>, vector<8x32xf32> -> vector<8x64xf32>
    %c0_38 = arith.constant 0 : index
    %c0_39 = arith.constant 0 : index
    %105 = vector.load %arg5[%c0_38, %c0_39] : memref<64x256xf32, #tpu.memory_space<vmem>>, vector<64x256xf32>
    %cst_40 = arith.constant dense<0.000000e+00> : vector<8x256xf32>
    %106 = tpu.matmul %104, %105, %cst_40 {dimension_numbers = #tpu.dot_dimension_numbers<[1], [0], [0], [1], [0, 0, 1, 1], [], []>} : vector<8x64xf32>, vector<64x256xf32>, vector<8x256xf32> -> vector<8x256xf32>
    %107 = vector.extract_strided_slice %106 {offsets = [0, 128], sizes = [8, 128], strides = [1, 1]} : vector<8x256xf32> to vector<8x128xf32>
    %108 = vector.broadcast %25 : vector<1x128xf32> to vector<8x128xf32>
    %109 = arith.addf %107, %108 : vector<8x128xf32>
    %110 = math.tanh %109 : vector<8x128xf32>
    %111 = vector.extract_strided_slice %110 {offsets = [0, 0], sizes = [8, 32], strides = [1, 1]} : vector<8x128xf32> to vector<8x32xf32>
    %cst_41 = arith.constant 1.000000e+00 : f32
    %112 = vector.broadcast %cst_41 : f32 to vector<8x32xf32>
    %113 = arith.addf %111, %112 : vector<8x32xf32>
    %cst_42 = arith.constant 5.000000e-01 : f32
    %114 = vector.broadcast %cst_42 : f32 to vector<8x32xf32>
    %115 = arith.mulf %114, %113 : vector<8x32xf32>
    %116 = vector.extract_strided_slice %110 {offsets = [0, 32], sizes = [8, 32], strides = [1, 1]} : vector<8x128xf32> to vector<8x32xf32>
    %cst_43 = arith.constant 1.000000e+00 : f32
    %117 = vector.broadcast %cst_43 : f32 to vector<8x32xf32>
    %118 = arith.addf %116, %117 : vector<8x32xf32>
    %cst_44 = arith.constant 5.000000e-01 : f32
    %119 = vector.broadcast %cst_44 : f32 to vector<8x32xf32>
    %120 = arith.mulf %119, %118 : vector<8x32xf32>
    %121 = vector.extract_strided_slice %110 {offsets = [0, 64], sizes = [8, 32], strides = [1, 1]} : vector<8x128xf32> to vector<8x32xf32>
    %122 = vector.extract_strided_slice %110 {offsets = [0, 96], sizes = [8, 32], strides = [1, 1]} : vector<8x128xf32> to vector<8x32xf32>
    %cst_45 = arith.constant 1.000000e+00 : f32
    %123 = vector.broadcast %cst_45 : f32 to vector<8x32xf32>
    %124 = arith.addf %122, %123 : vector<8x32xf32>
    %cst_46 = arith.constant 5.000000e-01 : f32
    %125 = vector.broadcast %cst_46 : f32 to vector<8x32xf32>
    %126 = arith.mulf %125, %124 : vector<8x32xf32>
    %127 = arith.mulf %120, %75 : vector<8x32xf32>
    %128 = arith.mulf %115, %121 : vector<8x32xf32>
    %129 = arith.addf %127, %128 : vector<8x32xf32>
    %130 = math.tanh %129 : vector<8x32xf32>
    %131 = arith.mulf %126, %130 : vector<8x32xf32>
    %c8 = arith.constant 8 : index
    %c0_47 = arith.constant 0 : index
    %132 = vector.load %arg11[%c8, %c0_47] : memref<64x32xf32, #tpu.memory_space<vmem>>, vector<8x32xf32>
    tpu.vector_store %arg11[%c8, %c0_47], %131 {strides = array<i32>} : memref<64x32xf32, #tpu.memory_space<vmem>>, vector<8x32xf32>,
    %133 = vector.extract_strided_slice %24 {offsets = [16, 0], sizes = [8, 128], strides = [1, 1]} : vector<64x128xf32> to vector<8x128xf32>
    %134 = vector.extract_strided_slice %106 {offsets = [0, 0], sizes = [8, 128], strides = [1, 1]} : vector<8x256xf32> to vector<8x128xf32>
    %135 = arith.addf %133, %134 : vector<8x128xf32>
    %136 = math.tanh %135 : vector<8x128xf32>
    %137 = vector.extract_strided_slice %136 {offsets = [0, 0], sizes = [8, 32], strides = [1, 1]} : vector<8x128xf32> to vector<8x32xf32>
    %cst_48 = arith.constant 1.000000e+00 : f32
    %138 = vector.broadcast %cst_48 : f32 to vector<8x32xf32>
    %139 = arith.addf %137, %138 : vector<8x32xf32>
    %cst_49 = arith.constant 5.000000e-01 : f32
    %140 = vector.broadcast %cst_49 : f32 to vector<8x32xf32>
    %141 = arith.mulf %140, %139 : vector<8x32xf32>
    %142 = vector.extract_strided_slice %136 {offsets = [0, 32], sizes = [8, 32], strides = [1, 1]} : vector<8x128xf32> to vector<8x32xf32>
    %cst_50 = arith.constant 1.000000e+00 : f32
    %143 = vector.broadcast %cst_50 : f32 to vector<8x32xf32>
    %144 = arith.addf %142, %143 : vector<8x32xf32>
    %cst_51 = arith.constant 5.000000e-01 : f32
    %145 = vector.broadcast %cst_51 : f32 to vector<8x32xf32>
    %146 = arith.mulf %145, %144 : vector<8x32xf32>
    %147 = vector.extract_strided_slice %136 {offsets = [0, 64], sizes = [8, 32], strides = [1, 1]} : vector<8x128xf32> to vector<8x32xf32>
    %148 = vector.extract_strided_slice %136 {offsets = [0, 96], sizes = [8, 32], strides = [1, 1]} : vector<8x128xf32> to vector<8x32xf32>
    %cst_52 = arith.constant 1.000000e+00 : f32
    %149 = vector.broadcast %cst_52 : f32 to vector<8x32xf32>
    %150 = arith.addf %148, %149 : vector<8x32xf32>
    %cst_53 = arith.constant 5.000000e-01 : f32
    %151 = vector.broadcast %cst_53 : f32 to vector<8x32xf32>
    %152 = arith.mulf %151, %150 : vector<8x32xf32>
    %153 = arith.mulf %146, %101 : vector<8x32xf32>
    %154 = arith.mulf %141, %147 : vector<8x32xf32>
    %155 = arith.addf %153, %154 : vector<8x32xf32>
    %156 = math.tanh %155 : vector<8x32xf32>
    %157 = arith.mulf %152, %156 : vector<8x32xf32>
    %158 = tpu.concatenate %157, %131 in 1 : vector<8x32xf32>, vector<8x32xf32> -> vector<8x64xf32>
    %c0_54 = arith.constant 0 : index
    %c0_55 = arith.constant 0 : index
    %159 = vector.load %arg5[%c0_54, %c0_55] : memref<64x256xf32, #tpu.memory_space<vmem>>, vector<64x256xf32>
    %cst_56 = arith.constant dense<0.000000e+00> : vector<8x256xf32>
    %160 = tpu.matmul %158, %159, %cst_56 {dimension_numbers = #tpu.dot_dimension_numbers<[1], [0], [0], [1], [0, 0, 1, 1], [], []>} : vector<8x64xf32>, vector<64x256xf32>, vector<8x256xf32> -> vector<8x256xf32>
    %161 = vector.extract_strided_slice %160 {offsets = [0, 128], sizes = [8, 128], strides = [1, 1]} : vector<8x256xf32> to vector<8x128xf32>
    %162 = vector.broadcast %25 : vector<1x128xf32> to vector<8x128xf32>
    %163 = arith.addf %161, %162 : vector<8x128xf32>
    %164 = math.tanh %163 : vector<8x128xf32>
    %165 = vector.extract_strided_slice %164 {offsets = [0, 0], sizes = [8, 32], strides = [1, 1]} : vector<8x128xf32> to vector<8x32xf32>
    %cst_57 = arith.constant 1.000000e+00 : f32
    %166 = vector.broadcast %cst_57 : f32 to vector<8x32xf32>
    %167 = arith.addf %165, %166 : vector<8x32xf32>
    %cst_58 = arith.constant 5.000000e-01 : f32
    %168 = vector.broadcast %cst_58 : f32 to vector<8x32xf32>
    %169 = arith.mulf %168, %167 : vector<8x32xf32>
    %170 = vector.extract_strided_slice %164 {offsets = [0, 32], sizes = [8, 32], strides = [1, 1]} : vector<8x128xf32> to vector<8x32xf32>
    %cst_59 = arith.constant 1.000000e+00 : f32
    %171 = vector.broadcast %cst_59 : f32 to vector<8x32xf32>
    %172 = arith.addf %170, %171 : vector<8x32xf32>
    %cst_60 = arith.constant 5.000000e-01 : f32
    %173 = vector.broadcast %cst_60 : f32 to vector<8x32xf32>
    %174 = arith.mulf %173, %172 : vector<8x32xf32>
    %175 = vector.extract_strided_slice %164 {offsets = [0, 64], sizes = [8, 32], strides = [1, 1]} : vector<8x128xf32> to vector<8x32xf32>
    %176 = vector.extract_strided_slice %164 {offsets = [0, 96], sizes = [8, 32], strides = [1, 1]} : vector<8x128xf32> to vector<8x32xf32>
    %cst_61 = arith.constant 1.000000e+00 : f32
    %177 = vector.broadcast %cst_61 : f32 to vector<8x32xf32>
    %178 = arith.addf %176, %177 : vector<8x32xf32>
    %cst_62 = arith.constant 5.000000e-01 : f32
    %179 = vector.broadcast %cst_62 : f32 to vector<8x32xf32>
    %180 = arith.mulf %179, %178 : vector<8x32xf32>
    %181 = arith.mulf %174, %129 : vector<8x32xf32>
    %182 = arith.mulf %169, %175 : vector<8x32xf32>
    %183 = arith.addf %181, %182 : vector<8x32xf32>
    %184 = math.tanh %183 : vector<8x32xf32>
    %185 = arith.mulf %180, %184 : vector<8x32xf32>
    %c16 = arith.constant 16 : index
    %c0_63 = arith.constant 0 : index
    %186 = vector.load %arg11[%c16, %c0_63] : memref<64x32xf32, #tpu.memory_space<vmem>>, vector<8x32xf32>
    tpu.vector_store %arg11[%c16, %c0_63], %185 {strides = array<i32>} : memref<64x32xf32, #tpu.memory_space<vmem>>, vector<8x32xf32>,
    %187 = vector.extract_strided_slice %24 {offsets = [24, 0], sizes = [8, 128], strides = [1, 1]} : vector<64x128xf32> to vector<8x128xf32>
    %188 = vector.extract_strided_slice %160 {offsets = [0, 0], sizes = [8, 128], strides = [1, 1]} : vector<8x256xf32> to vector<8x128xf32>
    %189 = arith.addf %187, %188 : vector<8x128xf32>
    %190 = math.tanh %189 : vector<8x128xf32>
    %191 = vector.extract_strided_slice %190 {offsets = [0, 0], sizes = [8, 32], strides = [1, 1]} : vector<8x128xf32> to vector<8x32xf32>
    %cst_64 = arith.constant 1.000000e+00 : f32
    %192 = vector.broadcast %cst_64 : f32 to vector<8x32xf32>
    %193 = arith.addf %191, %192 : vector<8x32xf32>
    %cst_65 = arith.constant 5.000000e-01 : f32
    %194 = vector.broadcast %cst_65 : f32 to vector<8x32xf32>
    %195 = arith.mulf %194, %193 : vector<8x32xf32>
    %196 = vector.extract_strided_slice %190 {offsets = [0, 32], sizes = [8, 32], strides = [1, 1]} : vector<8x128xf32> to vector<8x32xf32>
    %cst_66 = arith.constant 1.000000e+00 : f32
    %197 = vector.broadcast %cst_66 : f32 to vector<8x32xf32>
    %198 = arith.addf %196, %197 : vector<8x32xf32>
    %cst_67 = arith.constant 5.000000e-01 : f32
    %199 = vector.broadcast %cst_67 : f32 to vector<8x32xf32>
    %200 = arith.mulf %199, %198 : vector<8x32xf32>
    %201 = vector.extract_strided_slice %190 {offsets = [0, 64], sizes = [8, 32], strides = [1, 1]} : vector<8x128xf32> to vector<8x32xf32>
    %202 = vector.extract_strided_slice %190 {offsets = [0, 96], sizes = [8, 32], strides = [1, 1]} : vector<8x128xf32> to vector<8x32xf32>
    %cst_68 = arith.constant 1.000000e+00 : f32
    %203 = vector.broadcast %cst_68 : f32 to vector<8x32xf32>
    %204 = arith.addf %202, %203 : vector<8x32xf32>
    %cst_69 = arith.constant 5.000000e-01 : f32
    %205 = vector.broadcast %cst_69 : f32 to vector<8x32xf32>
    %206 = arith.mulf %205, %204 : vector<8x32xf32>
    %207 = arith.mulf %200, %155 : vector<8x32xf32>
    %208 = arith.mulf %195, %201 : vector<8x32xf32>
    %209 = arith.addf %207, %208 : vector<8x32xf32>
    %210 = math.tanh %209 : vector<8x32xf32>
    %211 = arith.mulf %206, %210 : vector<8x32xf32>
    %212 = tpu.concatenate %211, %185 in 1 : vector<8x32xf32>, vector<8x32xf32> -> vector<8x64xf32>
    %c0_70 = arith.constant 0 : index
    %c0_71 = arith.constant 0 : index
    %213 = vector.load %arg5[%c0_70, %c0_71] : memref<64x256xf32, #tpu.memory_space<vmem>>, vector<64x256xf32>
    %cst_72 = arith.constant dense<0.000000e+00> : vector<8x256xf32>
    %214 = tpu.matmul %212, %213, %cst_72 {dimension_numbers = #tpu.dot_dimension_numbers<[1], [0], [0], [1], [0, 0, 1, 1], [], []>} : vector<8x64xf32>, vector<64x256xf32>, vector<8x256xf32> -> vector<8x256xf32>
    %215 = vector.extract_strided_slice %214 {offsets = [0, 128], sizes = [8, 128], strides = [1, 1]} : vector<8x256xf32> to vector<8x128xf32>
    %216 = vector.broadcast %25 : vector<1x128xf32> to vector<8x128xf32>
    %217 = arith.addf %215, %216 : vector<8x128xf32>
    %218 = math.tanh %217 : vector<8x128xf32>
    %219 = vector.extract_strided_slice %218 {offsets = [0, 0], sizes = [8, 32], strides = [1, 1]} : vector<8x128xf32> to vector<8x32xf32>
    %cst_73 = arith.constant 1.000000e+00 : f32
    %220 = vector.broadcast %cst_73 : f32 to vector<8x32xf32>
    %221 = arith.addf %219, %220 : vector<8x32xf32>
    %cst_74 = arith.constant 5.000000e-01 : f32
    %222 = vector.broadcast %cst_74 : f32 to vector<8x32xf32>
    %223 = arith.mulf %222, %221 : vector<8x32xf32>
    %224 = vector.extract_strided_slice %218 {offsets = [0, 32], sizes = [8, 32], strides = [1, 1]} : vector<8x128xf32> to vector<8x32xf32>
    %cst_75 = arith.constant 1.000000e+00 : f32
    %225 = vector.broadcast %cst_75 : f32 to vector<8x32xf32>
    %226 = arith.addf %224, %225 : vector<8x32xf32>
    %cst_76 = arith.constant 5.000000e-01 : f32
    %227 = vector.broadcast %cst_76 : f32 to vector<8x32xf32>
    %228 = arith.mulf %227, %226 : vector<8x32xf32>
    %229 = vector.extract_strided_slice %218 {offsets = [0, 64], sizes = [8, 32], strides = [1, 1]} : vector<8x128xf32> to vector<8x32xf32>
    %230 = vector.extract_strided_slice %218 {offsets = [0, 96], sizes = [8, 32], strides = [1, 1]} : vector<8x128xf32> to vector<8x32xf32>
    %cst_77 = arith.constant 1.000000e+00 : f32
    %231 = vector.broadcast %cst_77 : f32 to vector<8x32xf32>
    %232 = arith.addf %230, %231 : vector<8x32xf32>
    %cst_78 = arith.constant 5.000000e-01 : f32
    %233 = vector.broadcast %cst_78 : f32 to vector<8x32xf32>
    %234 = arith.mulf %233, %232 : vector<8x32xf32>
    %235 = arith.mulf %228, %183 : vector<8x32xf32>
    %236 = arith.mulf %223, %229 : vector<8x32xf32>
    %237 = arith.addf %235, %236 : vector<8x32xf32>
    %238 = math.tanh %237 : vector<8x32xf32>
    %239 = arith.mulf %234, %238 : vector<8x32xf32>
    %c24 = arith.constant 24 : index
    %c0_79 = arith.constant 0 : index
    %240 = vector.load %arg11[%c24, %c0_79] : memref<64x32xf32, #tpu.memory_space<vmem>>, vector<8x32xf32>
    tpu.vector_store %arg11[%c24, %c0_79], %239 {strides = array<i32>} : memref<64x32xf32, #tpu.memory_space<vmem>>, vector<8x32xf32>,
    %241 = vector.extract_strided_slice %24 {offsets = [32, 0], sizes = [8, 128], strides = [1, 1]} : vector<64x128xf32> to vector<8x128xf32>
    %242 = vector.extract_strided_slice %214 {offsets = [0, 0], sizes = [8, 128], strides = [1, 1]} : vector<8x256xf32> to vector<8x128xf32>
    %243 = arith.addf %241, %242 : vector<8x128xf32>
    %244 = math.tanh %243 : vector<8x128xf32>
    %245 = vector.extract_strided_slice %244 {offsets = [0, 0], sizes = [8, 32], strides = [1, 1]} : vector<8x128xf32> to vector<8x32xf32>
    %cst_80 = arith.constant 1.000000e+00 : f32
    %246 = vector.broadcast %cst_80 : f32 to vector<8x32xf32>
    %247 = arith.addf %245, %246 : vector<8x32xf32>
    %cst_81 = arith.constant 5.000000e-01 : f32
    %248 = vector.broadcast %cst_81 : f32 to vector<8x32xf32>
    %249 = arith.mulf %248, %247 : vector<8x32xf32>
    %250 = vector.extract_strided_slice %244 {offsets = [0, 32], sizes = [8, 32], strides = [1, 1]} : vector<8x128xf32> to vector<8x32xf32>
    %cst_82 = arith.constant 1.000000e+00 : f32
    %251 = vector.broadcast %cst_82 : f32 to vector<8x32xf32>
    %252 = arith.addf %250, %251 : vector<8x32xf32>
    %cst_83 = arith.constant 5.000000e-01 : f32
    %253 = vector.broadcast %cst_83 : f32 to vector<8x32xf32>
    %254 = arith.mulf %253, %252 : vector<8x32xf32>
    %255 = vector.extract_strided_slice %244 {offsets = [0, 64], sizes = [8, 32], strides = [1, 1]} : vector<8x128xf32> to vector<8x32xf32>
    %256 = vector.extract_strided_slice %244 {offsets = [0, 96], sizes = [8, 32], strides = [1, 1]} : vector<8x128xf32> to vector<8x32xf32>
    %cst_84 = arith.constant 1.000000e+00 : f32
    %257 = vector.broadcast %cst_84 : f32 to vector<8x32xf32>
    %258 = arith.addf %256, %257 : vector<8x32xf32>
    %cst_85 = arith.constant 5.000000e-01 : f32
    %259 = vector.broadcast %cst_85 : f32 to vector<8x32xf32>
    %260 = arith.mulf %259, %258 : vector<8x32xf32>
    %261 = arith.mulf %254, %209 : vector<8x32xf32>
    %262 = arith.mulf %249, %255 : vector<8x32xf32>
    %263 = arith.addf %261, %262 : vector<8x32xf32>
    %264 = math.tanh %263 : vector<8x32xf32>
    %265 = arith.mulf %260, %264 : vector<8x32xf32>
    %266 = tpu.concatenate %265, %239 in 1 : vector<8x32xf32>, vector<8x32xf32> -> vector<8x64xf32>
    %c0_86 = arith.constant 0 : index
    %c0_87 = arith.constant 0 : index
    %267 = vector.load %arg5[%c0_86, %c0_87] : memref<64x256xf32, #tpu.memory_space<vmem>>, vector<64x256xf32>
    %cst_88 = arith.constant dense<0.000000e+00> : vector<8x256xf32>
    %268 = tpu.matmul %266, %267, %cst_88 {dimension_numbers = #tpu.dot_dimension_numbers<[1], [0], [0], [1], [0, 0, 1, 1], [], []>} : vector<8x64xf32>, vector<64x256xf32>, vector<8x256xf32> -> vector<8x256xf32>
    %269 = vector.extract_strided_slice %268 {offsets = [0, 128], sizes = [8, 128], strides = [1, 1]} : vector<8x256xf32> to vector<8x128xf32>
    %270 = vector.broadcast %25 : vector<1x128xf32> to vector<8x128xf32>
    %271 = arith.addf %269, %270 : vector<8x128xf32>
    %272 = math.tanh %271 : vector<8x128xf32>
    %273 = vector.extract_strided_slice %272 {offsets = [0, 0], sizes = [8, 32], strides = [1, 1]} : vector<8x128xf32> to vector<8x32xf32>
    %cst_89 = arith.constant 1.000000e+00 : f32
    %274 = vector.broadcast %cst_89 : f32 to vector<8x32xf32>
    %275 = arith.addf %273, %274 : vector<8x32xf32>
    %cst_90 = arith.constant 5.000000e-01 : f32
    %276 = vector.broadcast %cst_90 : f32 to vector<8x32xf32>
    %277 = arith.mulf %276, %275 : vector<8x32xf32>
    %278 = vector.extract_strided_slice %272 {offsets = [0, 32], sizes = [8, 32], strides = [1, 1]} : vector<8x128xf32> to vector<8x32xf32>
    %cst_91 = arith.constant 1.000000e+00 : f32
    %279 = vector.broadcast %cst_91 : f32 to vector<8x32xf32>
    %280 = arith.addf %278, %279 : vector<8x32xf32>
    %cst_92 = arith.constant 5.000000e-01 : f32
    %281 = vector.broadcast %cst_92 : f32 to vector<8x32xf32>
    %282 = arith.mulf %281, %280 : vector<8x32xf32>
    %283 = vector.extract_strided_slice %272 {offsets = [0, 64], sizes = [8, 32], strides = [1, 1]} : vector<8x128xf32> to vector<8x32xf32>
    %284 = vector.extract_strided_slice %272 {offsets = [0, 96], sizes = [8, 32], strides = [1, 1]} : vector<8x128xf32> to vector<8x32xf32>
    %cst_93 = arith.constant 1.000000e+00 : f32
    %285 = vector.broadcast %cst_93 : f32 to vector<8x32xf32>
    %286 = arith.addf %284, %285 : vector<8x32xf32>
    %cst_94 = arith.constant 5.000000e-01 : f32
    %287 = vector.broadcast %cst_94 : f32 to vector<8x32xf32>
    %288 = arith.mulf %287, %286 : vector<8x32xf32>
    %289 = arith.mulf %282, %237 : vector<8x32xf32>
    %290 = arith.mulf %277, %283 : vector<8x32xf32>
    %291 = arith.addf %289, %290 : vector<8x32xf32>
    %292 = math.tanh %291 : vector<8x32xf32>
    %293 = arith.mulf %288, %292 : vector<8x32xf32>
    %c32 = arith.constant 32 : index
    %c0_95 = arith.constant 0 : index
    %294 = vector.load %arg11[%c32, %c0_95] : memref<64x32xf32, #tpu.memory_space<vmem>>, vector<8x32xf32>
    tpu.vector_store %arg11[%c32, %c0_95], %293 {strides = array<i32>} : memref<64x32xf32, #tpu.memory_space<vmem>>, vector<8x32xf32>,
    %295 = vector.extract_strided_slice %24 {offsets = [40, 0], sizes = [8, 128], strides = [1, 1]} : vector<64x128xf32> to vector<8x128xf32>
    %296 = vector.extract_strided_slice %268 {offsets = [0, 0], sizes = [8, 128], strides = [1, 1]} : vector<8x256xf32> to vector<8x128xf32>
    %297 = arith.addf %295, %296 : vector<8x128xf32>
    %298 = math.tanh %297 : vector<8x128xf32>
    %299 = vector.extract_strided_slice %298 {offsets = [0, 0], sizes = [8, 32], strides = [1, 1]} : vector<8x128xf32> to vector<8x32xf32>
    %cst_96 = arith.constant 1.000000e+00 : f32
    %300 = vector.broadcast %cst_96 : f32 to vector<8x32xf32>
    %301 = arith.addf %299, %300 : vector<8x32xf32>
    %cst_97 = arith.constant 5.000000e-01 : f32
    %302 = vector.broadcast %cst_97 : f32 to vector<8x32xf32>
    %303 = arith.mulf %302, %301 : vector<8x32xf32>
    %304 = vector.extract_strided_slice %298 {offsets = [0, 32], sizes = [8, 32], strides = [1, 1]} : vector<8x128xf32> to vector<8x32xf32>
    %cst_98 = arith.constant 1.000000e+00 : f32
    %305 = vector.broadcast %cst_98 : f32 to vector<8x32xf32>
    %306 = arith.addf %304, %305 : vector<8x32xf32>
    %cst_99 = arith.constant 5.000000e-01 : f32
    %307 = vector.broadcast %cst_99 : f32 to vector<8x32xf32>
    %308 = arith.mulf %307, %306 : vector<8x32xf32>
    %309 = vector.extract_strided_slice %298 {offsets = [0, 64], sizes = [8, 32], strides = [1, 1]} : vector<8x128xf32> to vector<8x32xf32>
    %310 = vector.extract_strided_slice %298 {offsets = [0, 96], sizes = [8, 32], strides = [1, 1]} : vector<8x128xf32> to vector<8x32xf32>
    %cst_100 = arith.constant 1.000000e+00 : f32
    %311 = vector.broadcast %cst_100 : f32 to vector<8x32xf32>
    %312 = arith.addf %310, %311 : vector<8x32xf32>
    %cst_101 = arith.constant 5.000000e-01 : f32
    %313 = vector.broadcast %cst_101 : f32 to vector<8x32xf32>
    %314 = arith.mulf %313, %312 : vector<8x32xf32>
    %315 = arith.mulf %308, %263 : vector<8x32xf32>
    %316 = arith.mulf %303, %309 : vector<8x32xf32>
    %317 = arith.addf %315, %316 : vector<8x32xf32>
    %318 = math.tanh %317 : vector<8x32xf32>
    %319 = arith.mulf %314, %318 : vector<8x32xf32>
    %320 = tpu.concatenate %319, %293 in 1 : vector<8x32xf32>, vector<8x32xf32> -> vector<8x64xf32>
    %c0_102 = arith.constant 0 : index
    %c0_103 = arith.constant 0 : index
    %321 = vector.load %arg5[%c0_102, %c0_103] : memref<64x256xf32, #tpu.memory_space<vmem>>, vector<64x256xf32>
    %cst_104 = arith.constant dense<0.000000e+00> : vector<8x256xf32>
    %322 = tpu.matmul %320, %321, %cst_104 {dimension_numbers = #tpu.dot_dimension_numbers<[1], [0], [0], [1], [0, 0, 1, 1], [], []>} : vector<8x64xf32>, vector<64x256xf32>, vector<8x256xf32> -> vector<8x256xf32>
    %323 = vector.extract_strided_slice %322 {offsets = [0, 128], sizes = [8, 128], strides = [1, 1]} : vector<8x256xf32> to vector<8x128xf32>
    %324 = vector.broadcast %25 : vector<1x128xf32> to vector<8x128xf32>
    %325 = arith.addf %323, %324 : vector<8x128xf32>
    %326 = math.tanh %325 : vector<8x128xf32>
    %327 = vector.extract_strided_slice %326 {offsets = [0, 0], sizes = [8, 32], strides = [1, 1]} : vector<8x128xf32> to vector<8x32xf32>
    %cst_105 = arith.constant 1.000000e+00 : f32
    %328 = vector.broadcast %cst_105 : f32 to vector<8x32xf32>
    %329 = arith.addf %327, %328 : vector<8x32xf32>
    %cst_106 = arith.constant 5.000000e-01 : f32
    %330 = vector.broadcast %cst_106 : f32 to vector<8x32xf32>
    %331 = arith.mulf %330, %329 : vector<8x32xf32>
    %332 = vector.extract_strided_slice %326 {offsets = [0, 32], sizes = [8, 32], strides = [1, 1]} : vector<8x128xf32> to vector<8x32xf32>
    %cst_107 = arith.constant 1.000000e+00 : f32
    %333 = vector.broadcast %cst_107 : f32 to vector<8x32xf32>
    %334 = arith.addf %332, %333 : vector<8x32xf32>
    %cst_108 = arith.constant 5.000000e-01 : f32
    %335 = vector.broadcast %cst_108 : f32 to vector<8x32xf32>
    %336 = arith.mulf %335, %334 : vector<8x32xf32>
    %337 = vector.extract_strided_slice %326 {offsets = [0, 64], sizes = [8, 32], strides = [1, 1]} : vector<8x128xf32> to vector<8x32xf32>
    %338 = vector.extract_strided_slice %326 {offsets = [0, 96], sizes = [8, 32], strides = [1, 1]} : vector<8x128xf32> to vector<8x32xf32>
    %cst_109 = arith.constant 1.000000e+00 : f32
    %339 = vector.broadcast %cst_109 : f32 to vector<8x32xf32>
    %340 = arith.addf %338, %339 : vector<8x32xf32>
    %cst_110 = arith.constant 5.000000e-01 : f32
    %341 = vector.broadcast %cst_110 : f32 to vector<8x32xf32>
    %342 = arith.mulf %341, %340 : vector<8x32xf32>
    %343 = arith.mulf %336, %291 : vector<8x32xf32>
    %344 = arith.mulf %331, %337 : vector<8x32xf32>
    %345 = arith.addf %343, %344 : vector<8x32xf32>
    %346 = math.tanh %345 : vector<8x32xf32>
    %347 = arith.mulf %342, %346 : vector<8x32xf32>
    %c40 = arith.constant 40 : index
    %c0_111 = arith.constant 0 : index
    %348 = vector.load %arg11[%c40, %c0_111] : memref<64x32xf32, #tpu.memory_space<vmem>>, vector<8x32xf32>
    tpu.vector_store %arg11[%c40, %c0_111], %347 {strides = array<i32>} : memref<64x32xf32, #tpu.memory_space<vmem>>, vector<8x32xf32>,
    %349 = vector.extract_strided_slice %24 {offsets = [48, 0], sizes = [8, 128], strides = [1, 1]} : vector<64x128xf32> to vector<8x128xf32>
    %350 = vector.extract_strided_slice %322 {offsets = [0, 0], sizes = [8, 128], strides = [1, 1]} : vector<8x256xf32> to vector<8x128xf32>
    %351 = arith.addf %349, %350 : vector<8x128xf32>
    %352 = math.tanh %351 : vector<8x128xf32>
    %353 = vector.extract_strided_slice %352 {offsets = [0, 0], sizes = [8, 32], strides = [1, 1]} : vector<8x128xf32> to vector<8x32xf32>
    %cst_112 = arith.constant 1.000000e+00 : f32
    %354 = vector.broadcast %cst_112 : f32 to vector<8x32xf32>
    %355 = arith.addf %353, %354 : vector<8x32xf32>
    %cst_113 = arith.constant 5.000000e-01 : f32
    %356 = vector.broadcast %cst_113 : f32 to vector<8x32xf32>
    %357 = arith.mulf %356, %355 : vector<8x32xf32>
    %358 = vector.extract_strided_slice %352 {offsets = [0, 32], sizes = [8, 32], strides = [1, 1]} : vector<8x128xf32> to vector<8x32xf32>
    %cst_114 = arith.constant 1.000000e+00 : f32
    %359 = vector.broadcast %cst_114 : f32 to vector<8x32xf32>
    %360 = arith.addf %358, %359 : vector<8x32xf32>
    %cst_115 = arith.constant 5.000000e-01 : f32
    %361 = vector.broadcast %cst_115 : f32 to vector<8x32xf32>
    %362 = arith.mulf %361, %360 : vector<8x32xf32>
    %363 = vector.extract_strided_slice %352 {offsets = [0, 64], sizes = [8, 32], strides = [1, 1]} : vector<8x128xf32> to vector<8x32xf32>
    %364 = vector.extract_strided_slice %352 {offsets = [0, 96], sizes = [8, 32], strides = [1, 1]} : vector<8x128xf32> to vector<8x32xf32>
    %cst_116 = arith.constant 1.000000e+00 : f32
    %365 = vector.broadcast %cst_116 : f32 to vector<8x32xf32>
    %366 = arith.addf %364, %365 : vector<8x32xf32>
    %cst_117 = arith.constant 5.000000e-01 : f32
    %367 = vector.broadcast %cst_117 : f32 to vector<8x32xf32>
    %368 = arith.mulf %367, %366 : vector<8x32xf32>
    %369 = arith.mulf %362, %317 : vector<8x32xf32>
    %370 = arith.mulf %357, %363 : vector<8x32xf32>
    %371 = arith.addf %369, %370 : vector<8x32xf32>
    %372 = math.tanh %371 : vector<8x32xf32>
    %373 = arith.mulf %368, %372 : vector<8x32xf32>
    %374 = tpu.concatenate %373, %347 in 1 : vector<8x32xf32>, vector<8x32xf32> -> vector<8x64xf32>
    %c0_118 = arith.constant 0 : index
    %c0_119 = arith.constant 0 : index
    %375 = vector.load %arg5[%c0_118, %c0_119] : memref<64x256xf32, #tpu.memory_space<vmem>>, vector<64x256xf32>
    %cst_120 = arith.constant dense<0.000000e+00> : vector<8x256xf32>
    %376 = tpu.matmul %374, %375, %cst_120 {dimension_numbers = #tpu.dot_dimension_numbers<[1], [0], [0], [1], [0, 0, 1, 1], [], []>} : vector<8x64xf32>, vector<64x256xf32>, vector<8x256xf32> -> vector<8x256xf32>
    %377 = vector.extract_strided_slice %376 {offsets = [0, 128], sizes = [8, 128], strides = [1, 1]} : vector<8x256xf32> to vector<8x128xf32>
    %378 = vector.broadcast %25 : vector<1x128xf32> to vector<8x128xf32>
    %379 = arith.addf %377, %378 : vector<8x128xf32>
    %380 = math.tanh %379 : vector<8x128xf32>
    %381 = vector.extract_strided_slice %380 {offsets = [0, 0], sizes = [8, 32], strides = [1, 1]} : vector<8x128xf32> to vector<8x32xf32>
    %cst_121 = arith.constant 1.000000e+00 : f32
    %382 = vector.broadcast %cst_121 : f32 to vector<8x32xf32>
    %383 = arith.addf %381, %382 : vector<8x32xf32>
    %cst_122 = arith.constant 5.000000e-01 : f32
    %384 = vector.broadcast %cst_122 : f32 to vector<8x32xf32>
    %385 = arith.mulf %384, %383 : vector<8x32xf32>
    %386 = vector.extract_strided_slice %380 {offsets = [0, 32], sizes = [8, 32], strides = [1, 1]} : vector<8x128xf32> to vector<8x32xf32>
    %cst_123 = arith.constant 1.000000e+00 : f32
    %387 = vector.broadcast %cst_123 : f32 to vector<8x32xf32>
    %388 = arith.addf %386, %387 : vector<8x32xf32>
    %cst_124 = arith.constant 5.000000e-01 : f32
    %389 = vector.broadcast %cst_124 : f32 to vector<8x32xf32>
    %390 = arith.mulf %389, %388 : vector<8x32xf32>
    %391 = vector.extract_strided_slice %380 {offsets = [0, 64], sizes = [8, 32], strides = [1, 1]} : vector<8x128xf32> to vector<8x32xf32>
    %392 = vector.extract_strided_slice %380 {offsets = [0, 96], sizes = [8, 32], strides = [1, 1]} : vector<8x128xf32> to vector<8x32xf32>
    %cst_125 = arith.constant 1.000000e+00 : f32
    %393 = vector.broadcast %cst_125 : f32 to vector<8x32xf32>
    %394 = arith.addf %392, %393 : vector<8x32xf32>
    %cst_126 = arith.constant 5.000000e-01 : f32
    %395 = vector.broadcast %cst_126 : f32 to vector<8x32xf32>
    %396 = arith.mulf %395, %394 : vector<8x32xf32>
    %397 = arith.mulf %390, %345 : vector<8x32xf32>
    %398 = arith.mulf %385, %391 : vector<8x32xf32>
    %399 = arith.addf %397, %398 : vector<8x32xf32>
    %400 = math.tanh %399 : vector<8x32xf32>
    %401 = arith.mulf %396, %400 : vector<8x32xf32>
    %c48 = arith.constant 48 : index
    %c0_127 = arith.constant 0 : index
    %402 = vector.load %arg11[%c48, %c0_127] : memref<64x32xf32, #tpu.memory_space<vmem>>, vector<8x32xf32>
    tpu.vector_store %arg11[%c48, %c0_127], %401 {strides = array<i32>} : memref<64x32xf32, #tpu.memory_space<vmem>>, vector<8x32xf32>,
    %403 = vector.extract_strided_slice %24 {offsets = [56, 0], sizes = [8, 128], strides = [1, 1]} : vector<64x128xf32> to vector<8x128xf32>
    %404 = vector.extract_strided_slice %376 {offsets = [0, 0], sizes = [8, 128], strides = [1, 1]} : vector<8x256xf32> to vector<8x128xf32>
    %405 = arith.addf %403, %404 : vector<8x128xf32>
    %406 = math.tanh %405 : vector<8x128xf32>
    %407 = vector.extract_strided_slice %406 {offsets = [0, 0], sizes = [8, 32], strides = [1, 1]} : vector<8x128xf32> to vector<8x32xf32>
    %cst_128 = arith.constant 1.000000e+00 : f32
    %408 = vector.broadcast %cst_128 : f32 to vector<8x32xf32>
    %409 = arith.addf %407, %408 : vector<8x32xf32>
    %cst_129 = arith.constant 5.000000e-01 : f32
    %410 = vector.broadcast %cst_129 : f32 to vector<8x32xf32>
    %411 = arith.mulf %410, %409 : vector<8x32xf32>
    %412 = vector.extract_strided_slice %406 {offsets = [0, 32], sizes = [8, 32], strides = [1, 1]} : vector<8x128xf32> to vector<8x32xf32>
    %cst_130 = arith.constant 1.000000e+00 : f32
    %413 = vector.broadcast %cst_130 : f32 to vector<8x32xf32>
    %414 = arith.addf %412, %413 : vector<8x32xf32>
    %cst_131 = arith.constant 5.000000e-01 : f32
    %415 = vector.broadcast %cst_131 : f32 to vector<8x32xf32>
    %416 = arith.mulf %415, %414 : vector<8x32xf32>
    %417 = vector.extract_strided_slice %406 {offsets = [0, 64], sizes = [8, 32], strides = [1, 1]} : vector<8x128xf32> to vector<8x32xf32>
    %418 = vector.extract_strided_slice %406 {offsets = [0, 96], sizes = [8, 32], strides = [1, 1]} : vector<8x128xf32> to vector<8x32xf32>
    %cst_132 = arith.constant 1.000000e+00 : f32
    %419 = vector.broadcast %cst_132 : f32 to vector<8x32xf32>
    %420 = arith.addf %418, %419 : vector<8x32xf32>
    %cst_133 = arith.constant 5.000000e-01 : f32
    %421 = vector.broadcast %cst_133 : f32 to vector<8x32xf32>
    %422 = arith.mulf %421, %420 : vector<8x32xf32>
    %423 = arith.mulf %416, %371 : vector<8x32xf32>
    %424 = arith.mulf %411, %417 : vector<8x32xf32>
    %425 = arith.addf %423, %424 : vector<8x32xf32>
    %426 = math.tanh %425 : vector<8x32xf32>
    %427 = arith.mulf %422, %426 : vector<8x32xf32>
    %428 = tpu.concatenate %427, %401 in 1 : vector<8x32xf32>, vector<8x32xf32> -> vector<8x64xf32>
    %c0_134 = arith.constant 0 : index
    %c0_135 = arith.constant 0 : index
    %429 = vector.load %arg5[%c0_134, %c0_135] : memref<64x256xf32, #tpu.memory_space<vmem>>, vector<64x256xf32>
    %cst_136 = arith.constant dense<0.000000e+00> : vector<8x256xf32>
    %430 = tpu.matmul %428, %429, %cst_136 {dimension_numbers = #tpu.dot_dimension_numbers<[1], [0], [0], [1], [0, 0, 1, 1], [], []>} : vector<8x64xf32>, vector<64x256xf32>, vector<8x256xf32> -> vector<8x256xf32>
    %431 = vector.extract_strided_slice %430 {offsets = [0, 128], sizes = [8, 128], strides = [1, 1]} : vector<8x256xf32> to vector<8x128xf32>
    %432 = vector.broadcast %25 : vector<1x128xf32> to vector<8x128xf32>
    %433 = arith.addf %431, %432 : vector<8x128xf32>
    %434 = math.tanh %433 : vector<8x128xf32>
    %435 = vector.extract_strided_slice %434 {offsets = [0, 0], sizes = [8, 32], strides = [1, 1]} : vector<8x128xf32> to vector<8x32xf32>
    %cst_137 = arith.constant 1.000000e+00 : f32
    %436 = vector.broadcast %cst_137 : f32 to vector<8x32xf32>
    %437 = arith.addf %435, %436 : vector<8x32xf32>
    %cst_138 = arith.constant 5.000000e-01 : f32
    %438 = vector.broadcast %cst_138 : f32 to vector<8x32xf32>
    %439 = arith.mulf %438, %437 : vector<8x32xf32>
    %440 = vector.extract_strided_slice %434 {offsets = [0, 32], sizes = [8, 32], strides = [1, 1]} : vector<8x128xf32> to vector<8x32xf32>
    %cst_139 = arith.constant 1.000000e+00 : f32
    %441 = vector.broadcast %cst_139 : f32 to vector<8x32xf32>
    %442 = arith.addf %440, %441 : vector<8x32xf32>
    %cst_140 = arith.constant 5.000000e-01 : f32
    %443 = vector.broadcast %cst_140 : f32 to vector<8x32xf32>
    %444 = arith.mulf %443, %442 : vector<8x32xf32>
    %445 = vector.extract_strided_slice %434 {offsets = [0, 64], sizes = [8, 32], strides = [1, 1]} : vector<8x128xf32> to vector<8x32xf32>
    %446 = vector.extract_strided_slice %434 {offsets = [0, 96], sizes = [8, 32], strides = [1, 1]} : vector<8x128xf32> to vector<8x32xf32>
    %cst_141 = arith.constant 1.000000e+00 : f32
    %447 = vector.broadcast %cst_141 : f32 to vector<8x32xf32>
    %448 = arith.addf %446, %447 : vector<8x32xf32>
    %cst_142 = arith.constant 5.000000e-01 : f32
    %449 = vector.broadcast %cst_142 : f32 to vector<8x32xf32>
    %450 = arith.mulf %449, %448 : vector<8x32xf32>
    %451 = arith.mulf %444, %399 : vector<8x32xf32>
    %452 = arith.mulf %439, %445 : vector<8x32xf32>
    %453 = arith.addf %451, %452 : vector<8x32xf32>
    %454 = math.tanh %453 : vector<8x32xf32>
    %455 = arith.mulf %450, %454 : vector<8x32xf32>
    %c56 = arith.constant 56 : index
    %c0_143 = arith.constant 0 : index
    %456 = vector.load %arg11[%c56, %c0_143] : memref<64x32xf32, #tpu.memory_space<vmem>>, vector<8x32xf32>
    tpu.vector_store %arg11[%c56, %c0_143], %455 {strides = array<i32>} : memref<64x32xf32, #tpu.memory_space<vmem>>, vector<8x32xf32>,
    %c0_144 = arith.constant 0 : index
    %c0_145 = arith.constant 0 : index
    %457 = vector.load %arg11[%c0_144, %c0_145] : memref<64x32xf32, #tpu.memory_space<vmem>>, vector<64x32xf32>
    %c0_146 = arith.constant 0 : index
    %c0_147 = arith.constant 0 : index
    %458 = vector.load %arg8[%c0_146, %c0_147] : memref<32x128xf32, #tpu.memory_space<vmem>>, vector<32x128xf32>
    %cst_148 = arith.constant dense<0.000000e+00> : vector<64x128xf32>
    %459 = tpu.matmul %457, %458, %cst_148 {dimension_numbers = #tpu.dot_dimension_numbers<[1], [0], [0], [1], [0, 0, 1, 1], [], []>} : vector<64x32xf32>, vector<32x128xf32>, vector<64x128xf32> -> vector<64x128xf32>
    %c0_149 = arith.constant 0 : index
    %c0_150 = arith.constant 0 : index
    %460 = vector.load %arg9[%c0_149, %c0_150] : memref<1x128xf32, #tpu.memory_space<vmem>>, vector<1x128xf32>
    %461 = vector.broadcast %460 : vector<1x128xf32> to vector<64x128xf32>
    %462 = arith.addf %459, %461 : vector<64x128xf32>
    %cst_151 = arith.constant dense<0xFF800000> : vector<64xf32>
    %463 = vector.multi_reduction <maximumf>, %462, %cst_151 [1] : vector<64x128xf32> to vector<64xf32>
    %464 = vector.shape_cast %463 : vector<64xf32> to vector<64x1xf32>
    %465 = vector.broadcast %464 : vector<64x1xf32> to vector<64x128xf32>
    %466 = arith.subf %462, %465 : vector<64x128xf32>
    %467 = math.exp %466 : vector<64x128xf32>
    %cst_152 = arith.constant dense<0.000000e+00> : vector<64xf32>
    %468 = vector.multi_reduction <add>, %467, %cst_152 [1] : vector<64x128xf32> to vector<64xf32>
    %469 = vector.shape_cast %468 : vector<64xf32> to vector<64x1xf32>
    %470 = math.log %469 : vector<64x1xf32>
    %471 = vector.broadcast %470 : vector<64x1xf32> to vector<64x128xf32>
    %472 = arith.subf %466, %471 : vector<64x128xf32>
    %c0_153 = arith.constant 0 : index
    %c0_154 = arith.constant 0 : index
    %473 = vector.load %arg10[%c0_153, %c0_154] : memref<64x128xf32, #tpu.memory_space<vmem>>, vector<64x128xf32>
    tpu.vector_store %arg10[%c0_153, %c0_154], %472 {strides = array<i32>} : memref<64x128xf32, #tpu.memory_space<vmem>>, vector<64x128xf32>,
    return
  }
}

</mosaic_0001>

<llo_original>
// kernel: _forward_jit.1
$region0: #{_forward_jit.1}
  #allocation0 [shape = 'u32[]', space=smem, size = 0x4, offset = 0x4, fixed_abs, tag = 'smem constant byte address 0x4 - core index']
  #allocation1 [shape = 'u32[72,128]{1,0:T(1,128)}', space=vmem, size = 0x9000, scoped, tag = 'internal scratch']
  #allocation2 [shape = 'f32[64,32]{1,0:T(8,128)}', space=vmem, size = 0x8000, scoped, tag = 'scratch operand']
  %s0 = inlined_call_operand.vmem [shape: s32[64,1], index: 0, kind: input, shape index: {}]
  %s1 = inlined_call_operand.vmem [shape: f32[8,32], index: 1, kind: input, shape index: {}]
  %s2 = inlined_call_operand.vmem [shape: f32[128,64], index: 2, kind: input, shape index: {}]
  %s3 = inlined_call_operand.vmem [shape: f32[1,32], index: 3, kind: input, shape index: {}]
  %s4 = inlined_call_operand.vmem [shape: f32[32,128], index: 4, kind: input, shape index: {}]
  %s5 = inlined_call_operand.vmem [shape: f32[64,256], index: 5, kind: input, shape index: {}]
  %s6 = inlined_call_operand.vmem [shape: f32[1,128], index: 6, kind: input, shape index: {}]
  %s7 = inlined_call_operand.vmem [shape: f32[1,128], index: 7, kind: input, shape index: {}]
  %s8 = inlined_call_operand.vmem [shape: f32[32,128], index: 8, kind: input, shape index: {}]
  %s9 = inlined_call_operand.vmem [shape: f32[1,128], index: 9, kind: input, shape index: {}]
  %s10 = inlined_call_operand.vmem [shape: f32[64,128], index: 10, kind: output, shape index: {}]
  %s11 = sld [smem:[#allocation0]]
  $region50: #{_forward_jit.1} parent=0
    _
  %s13 = ssub.s32 1, %s11
  %s14 = scalar_select 0, %s13, %s11
  // Predicated region
  $region2: #{_forward_jit.1} parent=0 // pred_check
    _
  $region3: #{_forward_jit.1} parent=0 // pred_check_branch
    %16 = sbr.rel (0) target = $region5
  $region4: #{_forward_jit.1} parent=0 // pred_region
    _
  $region5: #{_forward_jit.1} parent=0 // pred_fallthru
    _
  // Predicated region
  $region6: #{_forward_jit.1} parent=0 // pred_check
    _
  $region7: #{_forward_jit.1} parent=0 // pred_check_branch
    %18 = sbr.rel (0) target = $region9
  $region8: #{_forward_jit.1} parent=0 // pred_region
    _
  $region9: #{_forward_jit.1} parent=0 // pred_fallthru
    _
  // Predicated region
  $region10: #{_forward_jit.1} parent=0 // pred_check
    _
  $region11: #{_forward_jit.1} parent=0 // pred_check_branch
    %20 = sbr.rel (0) target = $region13
  $region12: #{_forward_jit.1} parent=0 // pred_region
    _
  $region13: #{_forward_jit.1} parent=0 // pred_fallthru
    _
  // Predicated region
  $region14: #{_forward_jit.1} parent=0 // pred_check
    _
  $region15: #{_forward_jit.1} parent=0 // pred_check_branch
    %22 = sbr.rel (0) target = $region17
  $region16: #{_forward_jit.1} parent=0 // pred_region
    _
  $region17: #{_forward_jit.1} parent=0 // pred_fallthru
    _
  // Predicated region
  $region18: #{_forward_jit.1} parent=0 // pred_check
    _
  $region19: #{_forward_jit.1} parent=0 // pred_check_branch
    %24 = sbr.rel (0) target = $region21
  $region20: #{_forward_jit.1} parent=0 // pred_region
    _
  $region21: #{_forward_jit.1} parent=0 // pred_fallthru
    _
  // Predicated region
  $region22: #{_forward_jit.1} parent=0 // pred_check
    _
  $region23: #{_forward_jit.1} parent=0 // pred_check_branch
    %26 = sbr.rel (0) target = $region25
  $region24: #{_forward_jit.1} parent=0 // pred_region
    _
  $region25: #{_forward_jit.1} parent=0 // pred_fallthru
    _
  // Predicated region
  $region26: #{_forward_jit.1} parent=0 // pred_check
    _
  $region27: #{_forward_jit.1} parent=0 // pred_check_branch
    %28 = sbr.rel (0) target = $region29
  $region28: #{_forward_jit.1} parent=0 // pred_region
    _
  $region29: #{_forward_jit.1} parent=0 // pred_fallthru
    _
  // Predicated region
  $region30: #{_forward_jit.1} parent=0 // pred_check
    _
  $region31: #{_forward_jit.1} parent=0 // pred_check_branch
    %30 = sbr.rel (0) target = $region33
  $region32: #{_forward_jit.1} parent=0 // pred_region
    _
  $region33: #{_forward_jit.1} parent=0 // pred_fallthru
    _
  // Predicated region
  $region34: #{_forward_jit.1} parent=0 // pred_check
    _
  $region35: #{_forward_jit.1} parent=0 // pred_check_branch
    %32 = sbr.rel (0) target = $region37
  $region36: #{_forward_jit.1} parent=0 // pred_region
    _
  $region37: #{_forward_jit.1} parent=0 // pred_fallthru
    _
  // Predicated region
  $region38: #{_forward_jit.1} parent=0 // pred_check
    _
  $region39: #{_forward_jit.1} parent=0 // pred_check_branch
    %34 = sbr.rel (0) target = $region41
  $region40: #{_forward_jit.1} parent=0 // pred_region
    _
  $region41: #{_forward_jit.1} parent=0 // pred_fallthru
    _
  %v35 = vld [vmem:[%s0] sm:$0xff]
  %v36 = vld [vmem:[%s0 + $0x8] sm:$0xff]
  %v37 = vld [vmem:[%s0 + $0x10] sm:$0xff]
  %v38 = vld [vmem:[%s0 + $0x18] sm:$0xff]
  %v39 = vld [vmem:[%s0 + $0x20] sm:$0xff]
  %v40 = vld [vmem:[%s0 + $0x28] sm:$0xff]
  %v41 = vld [vmem:[%s0 + $0x30] sm:$0xff]
  %v42 = vld [vmem:[%s0 + $0x38] sm:$0xff]
  %v43 = vlaneseq
  %v44 = vand.u32 %v43, 127
  %45 = vset.pattern.permute.xlu0 0
  %46 = vperm.xlu0 %45, %v35
  %v47 = vpop.permute.xlu0 %46
  %48 = vset.pattern.permute.xlu0 0
  %49 = vperm.xlu0 %48, %v36
  %v50 = vpop.permute.xlu0 %49
  %51 = vset.pattern.permute.xlu0 0
  %52 = vperm.xlu0 %51, %v37
  %v53 = vpop.permute.xlu0 %52
  %54 = vset.pattern.permute.xlu0 0
  %55 = vperm.xlu0 %54, %v38
  %v56 = vpop.permute.xlu0 %55
  %57 = vset.pattern.permute.xlu0 0
  %58 = vperm.xlu0 %57, %v39
  %v59 = vpop.permute.xlu0 %58
  %60 = vset.pattern.permute.xlu0 0
  %61 = vperm.xlu0 %60, %v40
  %v62 = vpop.permute.xlu0 %61
  %63 = vset.pattern.permute.xlu0 0
  %64 = vperm.xlu0 %63, %v41
  %v65 = vpop.permute.xlu0 %64
  %66 = vset.pattern.permute.xlu0 0
  %67 = vperm.xlu0 %66, %v42
  %v68 = vpop.permute.xlu0 %67
  %vm69 = vcmp.eq.s32.totalorder %v47, %v44
  %vm70 = vcmp.eq.s32.totalorder %v50, %v44
  %vm71 = vcmp.eq.s32.totalorder %v53, %v44
  %vm72 = vcmp.eq.s32.totalorder %v56, %v44
  %vm73 = vcmp.eq.s32.totalorder %v59, %v44
  %vm74 = vcmp.eq.s32.totalorder %v62, %v44
  %vm75 = vcmp.eq.s32.totalorder %v65, %v44
  %vm76 = vcmp.eq.s32.totalorder %v68, %v44
  %v77 = vsel %vm69, 1, 0
  %v78 = vsel %vm70, 1, 0
  %v79 = vsel %vm71, 1, 0
  %v80 = vsel %vm72, 1, 0
  %v81 = vsel %vm73, 1, 0
  %v82 = vsel %vm74, 1, 0
  %v83 = vsel %vm75, 1, 0
  %v84 = vsel %vm76, 1, 0
  %v85 = vcvt.s32.f32 %v77
  %v86 = vcvt.s32.f32 %v78
  %v87 = vcvt.s32.f32 %v79
  %v88 = vcvt.s32.f32 %v80
  %v89 = vcvt.s32.f32 %v81
  %v90 = vcvt.s32.f32 %v82
  %v91 = vcvt.s32.f32 %v83
  %v92 = vcvt.s32.f32 %v84
  %v93 = vld [vmem:[%s2] sm:$0xff]
  %v94 = vld [vmem:[%s2 + $0x8] sm:$0xff]
  %v95 = vld [vmem:[%s2 + $0x10] sm:$0xff]
  %v96 = vld [vmem:[%s2 + $0x18] sm:$0xff]
  %v97 = vld [vmem:[%s2 + $0x20] sm:$0xff]
  %v98 = vld [vmem:[%s2 + $0x28] sm:$0xff]
  %v99 = vld [vmem:[%s2 + $0x30] sm:$0xff]
  %v100 = vld [vmem:[%s2 + $0x38] sm:$0xff]
  %v101 = vld [vmem:[%s2 + $0x40] sm:$0xff]
  %v102 = vld [vmem:[%s2 + $0x48] sm:$0xff]
  %v103 = vld [vmem:[%s2 + $0x50] sm:$0xff]
  %v104 = vld [vmem:[%s2 + $0x58] sm:$0xff]
  %v105 = vld [vmem:[%s2 + $0x60] sm:$0xff]
  %v106 = vld [vmem:[%s2 + $0x68] sm:$0xff]
  %v107 = vld [vmem:[%s2 + $0x70] sm:$0xff]
  %v108 = vld [vmem:[%s2 + $0x78] sm:$0xff]
  %109 = vmatpush.msra.mxu0 %v108
  %110 = vmatpush.msra.mxu0 %v107
  %111 = vmatpush.msra.mxu0 %v106
  %112 = vmatpush.msra.mxu0 %v105
  %113 = vmatpush.msra.mxu0 %v104
  %114 = vmatpush.msra.mxu0 %v103
  %115 = vmatpush.msra.mxu0 %v102
  %116 = vmatpush.msra.mxu0 %v101
  %117 = vmatpush.msra.mxu0 %v100
  %118 = vmatpush.msra.mxu0 %v99
  %119 = vmatpush.msra.mxu0 %v98
  %120 = vmatpush.msra.mxu0 %v97
  %121 = vmatpush.msra.mxu0 %v96
  %122 = vmatpush.msra.mxu0 %v95
  %123 = vmatpush.msra.mxu0 %v94
  %124 = vmatpush.msra.mxu0 %v93
  %125 = vmatmul.f32.gmra.mxu0 %v85
  %v126 = vpop.f32.mrf.mxu0
  %v127 = vadd.f32 0.0, %v126
  %128 = vmatmul.f32.gmra.mxu0 %v86
  %v129 = vpop.f32.mrf.mxu0
  %v130 = vadd.f32 0.0, %v129
  %131 = vmatmul.f32.gmra.mxu0 %v87
  %v132 = vpop.f32.mrf.mxu0
  %v133 = vadd.f32 0.0, %v132
  %134 = vmatmul.f32.gmra.mxu0 %v88
  %v135 = vpop.f32.mrf.mxu0
  %v136 = vadd.f32 0.0, %v135
  %137 = vmatmul.f32.gmra.mxu0 %v89
  %v138 = vpop.f32.mrf.mxu0
  %v139 = vadd.f32 0.0, %v138
  %140 = vmatmul.f32.gmra.mxu0 %v90
  %v141 = vpop.f32.mrf.mxu0
  %v142 = vadd.f32 0.0, %v141
  %143 = vmatmul.f32.gmra.mxu0 %v91
  %v144 = vpop.f32.mrf.mxu0
  %v145 = vadd.f32 0.0, %v144
  %146 = vmatmul.f32.gmra.mxu0 %v92
  %v147 = vpop.f32.mrf.mxu0
  %v148 = vadd.f32 0.0, %v147
  %149 = vdwg.mxu0
  %v150 = vld [vmem:[%s1] sm:$0xff]
  %v151 = vlaneseq
  %v152 = vshrl.u32 %v151, 7
  %v153 = vadd.s32 %v152, 8
  %v154 = vadd.s32 %v152, 16
  %v155 = vadd.s32 %v152, 24
  %v156 = vadd.s32 %v152, 32
  %v157 = vadd.s32 %v152, 40
  %v158 = vadd.s32 %v152, 48
  %v159 = vadd.s32 %v152, 56
  %vm160 = vcmp.lt.s32.totalorder %v152, 16
  %vm161 = vcmp.lt.s32.totalorder %v153, 16
  %vm162 = vcmp.lt.s32.totalorder %v154, 16
  %vm163 = vcmp.lt.s32.totalorder %v155, 16
  %vm164 = vcmp.lt.s32.totalorder %v156, 16
  %vm165 = vcmp.lt.s32.totalorder %v157, 16
  %vm166 = vcmp.lt.s32.totalorder %v158, 16
  %vm167 = vcmp.lt.s32.totalorder %v159, 16
  %v168 = vld [vmem:[%s3] sm:$0x1]
  %v170 = vperm.slane %v168, 0
  %171 = vrot.lane.b32.xlu0 %v170, 32
  %v172 = vpop.permute.xlu0 %171
  %v174 = vadd.f32 %v127, %v172
  %v175 = vadd.f32 %v130, %v172
  %v176 = vadd.f32 %v133, %v172
  %v177 = vadd.f32 %v136, %v172
  %v178 = vadd.f32 %v139, %v172
  %v179 = vadd.f32 %v142, %v172
  %v180 = vadd.f32 %v145, %v172
  %v181 = vadd.f32 %v148, %v172
  %v182 = vadd.f32 %v127, %v150
  %v183 = vadd.f32 %v130, %v150
  %v184 = vadd.f32 %v133, %v150
  %v185 = vadd.f32 %v136, %v150
  %v186 = vadd.f32 %v139, %v150
  %v187 = vadd.f32 %v142, %v150
  %v188 = vadd.f32 %v145, %v150
  %v189 = vadd.f32 %v148, %v150
  %198 = vrot.lane.b32.xlu0 %v182, 32
  %v199 = vpop.permute.xlu0 %198
  %200 = vrot.lane.b32.xlu0 %v183, 32
  %v201 = vpop.permute.xlu0 %200
  %202 = vrot.lane.b32.xlu0 %v184, 32
  %v203 = vpop.permute.xlu0 %202
  %204 = vrot.lane.b32.xlu0 %v185, 32
  %v205 = vpop.permute.xlu0 %204
  %206 = vrot.lane.b32.xlu0 %v186, 32
  %v207 = vpop.permute.xlu0 %206
  %208 = vrot.lane.b32.xlu0 %v187, 32
  %v209 = vpop.permute.xlu0 %208
  %210 = vrot.lane.b32.xlu0 %v188, 32
  %v211 = vpop.permute.xlu0 %210
  %212 = vrot.lane.b32.xlu0 %v189, 32
  %v213 = vpop.permute.xlu0 %212
  %v222 = vsel %vm160, %v174, %v199
  %v223 = vsel %vm161, %v175, %v201
  %v224 = vsel %vm162, %v176, %v203
  %v225 = vsel %vm163, %v177, %v205
  %v226 = vsel %vm164, %v178, %v207
  %v227 = vsel %vm165, %v179, %v209
  %v228 = vsel %vm166, %v180, %v211
  %v229 = vsel %vm167, %v181, %v213
  %v230 = vld [vmem:[%s4] sm:$0xff]
  %v231 = vld [vmem:[%s4 + $0x8] sm:$0xff]
  %v232 = vld [vmem:[%s4 + $0x10] sm:$0xff]
  %v233 = vld [vmem:[%s4 + $0x18] sm:$0xff]
  %v234 = vld [vmem:[%s6] sm:$0x1]
  %v236 = vperm.slane %v234, 0
  %246 = vrot.lane.b32.xlu0 %v222, 96
  %v247 = vpop.permute.xlu0 %246
  %248 = vrot.lane.b32.xlu0 %v223, 96
  %v249 = vpop.permute.xlu0 %248
  %250 = vrot.lane.b32.xlu0 %v224, 96
  %v251 = vpop.permute.xlu0 %250
  %252 = vrot.lane.b32.xlu0 %v225, 96
  %v253 = vpop.permute.xlu0 %252
  %254 = vrot.lane.b32.xlu0 %v226, 96
  %v255 = vpop.permute.xlu0 %254
  %256 = vrot.lane.b32.xlu0 %v227, 96
  %v257 = vpop.permute.xlu0 %256
  %258 = vrot.lane.b32.xlu0 %v228, 96
  %v259 = vpop.permute.xlu0 %258
  %260 = vrot.lane.b32.xlu0 %v229, 96
  %v261 = vpop.permute.xlu0 %260
  %vm262 = vcmask 261120
  %v263 = vsel %vm262, %v247, 0
  %v265 = vsel %vm262, %v249, 0
  %v267 = vsel %vm262, %v251, 0
  %v269 = vsel %vm262, %v253, 0
  %v271 = vsel %vm262, %v255, 0
  %v273 = vsel %vm262, %v257, 0
  %v275 = vsel %vm262, %v259, 0
  %v277 = vsel %vm262, %v261, 0
  %279 = vmatpush.msra.mxu0 0.0
  %280 = vmatpush.msra.mxu0 0.0
  %281 = vmatpush.msra.mxu0 0.0
  %282 = vmatpush.msra.mxu0 0.0
  %283 = vmatpush.msra.mxu0 0.0
  %284 = vmatpush.msra.mxu0 0.0
  %285 = vmatpush.msra.mxu0 0.0
  %286 = vmatpush.msra.mxu0 0.0
  %287 = vmatpush.msra.mxu0 0.0
  %288 = vmatpush.msra.mxu0 0.0
  %289 = vmatpush.msra.mxu0 0.0
  %290 = vmatpush.msra.mxu0 0.0
  %291 = vmatpush.msra.mxu0 %v233
  %292 = vmatpush.msra.mxu0 %v232
  %293 = vmatpush.msra.mxu0 %v231
  %294 = vmatpush.msra.mxu0 %v230
  %295 = vmatmul.f32.gmra.mxu0 %v263
  %v296 = vpop.f32.mrf.mxu0
  %v297 = vadd.f32 %v236, %v296
  %298 = vmatmul.f32.gmra.mxu0 %v265
  %v299 = vpop.f32.mrf.mxu0
  %v300 = vadd.f32 %v236, %v299
  %301 = vmatmul.f32.gmra.mxu0 %v267
  %v302 = vpop.f32.mrf.mxu0
  %v303 = vadd.f32 %v236, %v302
  %304 = vmatmul.f32.gmra.mxu0 %v269
  %v305 = vpop.f32.mrf.mxu0
  %v306 = vadd.f32 %v236, %v305
  %307 = vmatmul.f32.gmra.mxu0 %v271
  %v308 = vpop.f32.mrf.mxu0
  %v309 = vadd.f32 %v236, %v308
  %310 = vmatmul.f32.gmra.mxu0 %v273
  %v311 = vpop.f32.mrf.mxu0
  %v312 = vadd.f32 %v236, %v311
  %313 = vmatmul.f32.gmra.mxu0 %v275
  %v314 = vpop.f32.mrf.mxu0
  %v315 = vadd.f32 %v236, %v314
  %316 = vmatmul.f32.gmra.mxu0 %v277
  %v317 = vpop.f32.mrf.mxu0
  %v318 = vadd.f32 %v236, %v317
  %319 = vdwg.mxu0
  %v320 = vld [vmem:[%s7] sm:$0x1]
  %v321 = vtanh.pop %v297
  %v322 = vadd.f32 %v321, 1.0
  %v323 = vmul.f32 %v322, 0.5
  %v324 = vmul.f32 %v323, 0.0
  %326 = vrot.lane.b32.xlu0 %v321, 64
  %v327 = vpop.permute.xlu0 %326
  %v329 = vmul.f32 %v323, %v327
  %331 = vrot.lane.b32.xlu0 %v329, 32
  %v332 = vpop.permute.xlu0 %331
  %v334 = vadd.f32 %v324, %v332
  %v335 = vtanh.pop %v334
  %337 = vrot.lane.b32.xlu0 %v335, 64
  %v338 = vpop.permute.xlu0 %337
  %v340 = vmul.f32 %v323, %v338
  %342 = vrot.lane.b32.xlu0 %v340, 32
  %v343 = vpop.permute.xlu0 %342
  %v345 = vsel %vm262, %v343, 0.0
  %v346 = vld [vmem:[%s5] sm:$0xff]
  %v347 = vld [vmem:[%s5 + $0x8] sm:$0xff]
  %v348 = vld [vmem:[%s5 + $0x10] sm:$0xff]
  %v349 = vld [vmem:[%s5 + $0x18] sm:$0xff]
  %v350 = vld [vmem:[%s5 + $0x20] sm:$0xff]
  %v351 = vld [vmem:[%s5 + $0x28] sm:$0xff]
  %v352 = vld [vmem:[%s5 + $0x30] sm:$0xff]
  %v353 = vld [vmem:[%s5 + $0x38] sm:$0xff]
  %v354 = vld [vmem:[%s5 + $0x40] sm:$0xff]
  %v355 = vld [vmem:[%s5 + $0x48] sm:$0xff]
  %v356 = vld [vmem:[%s5 + $0x50] sm:$0xff]
  %v357 = vld [vmem:[%s5 + $0x58] sm:$0xff]
  %v358 = vld [vmem:[%s5 + $0x60] sm:$0xff]
  %v359 = vld [vmem:[%s5 + $0x68] sm:$0xff]
  %v360 = vld [vmem:[%s5 + $0x70] sm:$0xff]
  %v361 = vld [vmem:[%s5 + $0x78] sm:$0xff]
  %vm362 = vcmask 523264
  %v364 = vsel %vm362, %v345, 0
  %366 = vmatpush.msra.mxu0 0.0
  %367 = vmatpush.msra.mxu0 0.0
  %368 = vmatpush.msra.mxu0 0.0
  %369 = vmatpush.msra.mxu0 0.0
  %370 = vmatpush.msra.mxu0 0.0
  %371 = vmatpush.msra.mxu0 0.0
  %372 = vmatpush.msra.mxu0 0.0
  %373 = vmatpush.msra.mxu0 0.0
  %374 = vmatpush.msra.mxu0 %v360
  %375 = vmatpush.msra.mxu0 %v358
  %376 = vmatpush.msra.mxu0 %v356
  %377 = vmatpush.msra.mxu0 %v354
  %378 = vmatpush.msra.mxu0 %v352
  %379 = vmatpush.msra.mxu0 %v350
  %380 = vmatpush.msra.mxu0 %v348
  %381 = vmatpush.msra.mxu0 %v346
  %382 = vmatmul.f32.gmra.mxu0 %v364
  %v383 = vpop.f32.mrf.mxu0
  %v384 = vadd.f32 0.0, %v383
  %385 = vdwg.mxu0
  %386 = vmatpush.msra.mxu0 0.0
  %387 = vmatpush.msra.mxu0 0.0
  %388 = vmatpush.msra.mxu0 0.0
  %389 = vmatpush.msra.mxu0 0.0
  %390 = vmatpush.msra.mxu0 0.0
  %391 = vmatpush.msra.mxu0 0.0
  %392 = vmatpush.msra.mxu0 0.0
  %393 = vmatpush.msra.mxu0 0.0
  %394 = vmatpush.msra.mxu0 %v361
  %395 = vmatpush.msra.mxu0 %v359
  %396 = vmatpush.msra.mxu0 %v357
  %397 = vmatpush.msra.mxu0 %v355
  %398 = vmatpush.msra.mxu0 %v353
  %399 = vmatpush.msra.mxu0 %v351
  %400 = vmatpush.msra.mxu0 %v349
  %401 = vmatpush.msra.mxu0 %v347
  %402 = vmatmul.f32.gmra.mxu0 %v364
  %v403 = vpop.f32.mrf.mxu0
  %v404 = vadd.f32 0.0, %v403
  %405 = vdwg.mxu0
  %v407 = vperm.slane %v320, 0
  %v409 = vadd.f32 %v404, %v407
  %v410 = vtanh.pop %v409
  %v411 = vadd.f32 %v410, 1.0
  %v412 = vmul.f32 %v411, 0.5
  %v413 = vmul.f32 %v412, 0.0
  %415 = vrot.lane.b32.xlu0 %v410, 64
  %v416 = vpop.permute.xlu0 %415
  %v418 = vmul.f32 %v412, %v416
  %420 = vrot.lane.b32.xlu0 %v418, 32
  %v421 = vpop.permute.xlu0 %420
  %v423 = vadd.f32 %v413, %v421
  %v424 = vtanh.pop %v423
  %426 = vrot.lane.b32.xlu0 %v424, 64
  %v427 = vpop.permute.xlu0 %426
  %v429 = vmul.f32 %v412, %v427
  %431 = vrot.lane.b32.xlu0 %v429, 32
  %v432 = vpop.permute.xlu0 %431
  %434 = vst.msk [vmem:[#allocation2] sm:$0xff] %vm262, %v432
  %v435 = vadd.f32 %v300, %v384
  %v436 = vtanh.pop %v435
  %v437 = vadd.f32 %v436, 1.0
  %v438 = vmul.f32 %v437, 0.5
  %v439 = vmul.f32 %v438, %v334
  %441 = vrot.lane.b32.xlu0 %v436, 64
  %v442 = vpop.permute.xlu0 %441
  %v444 = vmul.f32 %v438, %v442
  %446 = vrot.lane.b32.xlu0 %v444, 32
  %v447 = vpop.permute.xlu0 %446
  %v449 = vadd.f32 %v439, %v447
  %v450 = vtanh.pop %v449
  %452 = vrot.lane.b32.xlu0 %v450, 64
  %v453 = vpop.permute.xlu0 %452
  %v455 = vmul.f32 %v438, %v453
  %457 = vrot.lane.b32.xlu0 %v455, 32
  %v458 = vpop.permute.xlu0 %457
  %460 = vrot.lane.b32.xlu0 %v429, 64
  %v461 = vpop.permute.xlu0 %460
  %v463 = vsel %vm262, %v458, %v461
  %v464 = vld [vmem:[%s5] sm:$0xff]
  %v465 = vld [vmem:[%s5 + $0x8] sm:$0xff]
  %v466 = vld [vmem:[%s5 + $0x10] sm:$0xff]
  %v467 = vld [vmem:[%s5 + $0x18] sm:$0xff]
  %v468 = vld [vmem:[%s5 + $0x20] sm:$0xff]
  %v469 = vld [vmem:[%s5 + $0x28] sm:$0xff]
  %v470 = vld [vmem:[%s5 + $0x30] sm:$0xff]
  %v471 = vld [vmem:[%s5 + $0x38] sm:$0xff]
  %v472 = vld [vmem:[%s5 + $0x40] sm:$0xff]
  %v473 = vld [vmem:[%s5 + $0x48] sm:$0xff]
  %v474 = vld [vmem:[%s5 + $0x50] sm:$0xff]
  %v475 = vld [vmem:[%s5 + $0x58] sm:$0xff]
  %v476 = vld [vmem:[%s5 + $0x60] sm:$0xff]
  %v477 = vld [vmem:[%s5 + $0x68] sm:$0xff]
  %v478 = vld [vmem:[%s5 + $0x70] sm:$0xff]
  %v479 = vld [vmem:[%s5 + $0x78] sm:$0xff]
  %v481 = vsel %vm362, %v463, 0
  %483 = vmatpush.msra.mxu0 0.0
  %484 = vmatpush.msra.mxu0 0.0
  %485 = vmatpush.msra.mxu0 0.0
  %486 = vmatpush.msra.mxu0 0.0
  %487 = vmatpush.msra.mxu0 0.0
  %488 = vmatpush.msra.mxu0 0.0
  %489 = vmatpush.msra.mxu0 0.0
  %490 = vmatpush.msra.mxu0 0.0
  %491 = vmatpush.msra.mxu0 %v478
  %492 = vmatpush.msra.mxu0 %v476
  %493 = vmatpush.msra.mxu0 %v474
  %494 = vmatpush.msra.mxu0 %v472
  %495 = vmatpush.msra.mxu0 %v470
  %496 = vmatpush.msra.mxu0 %v468
  %497 = vmatpush.msra.mxu0 %v466
  %498 = vmatpush.msra.mxu0 %v464
  %499 = vmatmul.f32.gmra.mxu0 %v481
  %v500 = vpop.f32.mrf.mxu0
  %v501 = vadd.f32 0.0, %v500
  %502 = vdwg.mxu0
  %503 = vmatpush.msra.mxu0 0.0
  %504 = vmatpush.msra.mxu0 0.0
  %505 = vmatpush.msra.mxu0 0.0
  %506 = vmatpush.msra.mxu0 0.0
  %507 = vmatpush.msra.mxu0 0.0
  %508 = vmatpush.msra.mxu0 0.0
  %509 = vmatpush.msra.mxu0 0.0
  %510 = vmatpush.msra.mxu0 0.0
  %511 = vmatpush.msra.mxu0 %v479
  %512 = vmatpush.msra.mxu0 %v477
  %513 = vmatpush.msra.mxu0 %v475
  %514 = vmatpush.msra.mxu0 %v473
  %515 = vmatpush.msra.mxu0 %v471
  %516 = vmatpush.msra.mxu0 %v469
  %517 = vmatpush.msra.mxu0 %v467
  %518 = vmatpush.msra.mxu0 %v465
  %519 = vmatmul.f32.gmra.mxu0 %v481
  %v520 = vpop.f32.mrf.mxu0
  %v521 = vadd.f32 0.0, %v520
  %522 = vdwg.mxu0
  %v523 = vadd.f32 %v521, %v407
  %v524 = vtanh.pop %v523
  %v525 = vadd.f32 %v524, 1.0
  %v526 = vmul.f32 %v525, 0.5
  %v527 = vmul.f32 %v526, %v423
  %529 = vrot.lane.b32.xlu0 %v524, 64
  %v530 = vpop.permute.xlu0 %529
  %v532 = vmul.f32 %v526, %v530
  %534 = vrot.lane.b32.xlu0 %v532, 32
  %v535 = vpop.permute.xlu0 %534
  %v537 = vadd.f32 %v527, %v535
  %v538 = vtanh.pop %v537
  %540 = vrot.lane.b32.xlu0 %v538, 64
  %v541 = vpop.permute.xlu0 %540
  %v543 = vmul.f32 %v526, %v541
  %545 = vrot.lane.b32.xlu0 %v543, 32
  %v546 = vpop.permute.xlu0 %545
  %548 = vst.msk [vmem:[#allocation2 + $0x8] sm:$0xff] %vm262, %v546
  %v549 = vadd.f32 %v303, %v501
  %v550 = vtanh.pop %v549
  %v551 = vadd.f32 %v550, 1.0
  %v552 = vmul.f32 %v551, 0.5
  %v553 = vmul.f32 %v552, %v449
  %555 = vrot.lane.b32.xlu0 %v550, 64
  %v556 = vpop.permute.xlu0 %555
  %v558 = vmul.f32 %v552, %v556
  %560 = vrot.lane.b32.xlu0 %v558, 32
  %v561 = vpop.permute.xlu0 %560
  %v563 = vadd.f32 %v553, %v561
  %v564 = vtanh.pop %v563
  %566 = vrot.lane.b32.xlu0 %v564, 64
  %v567 = vpop.permute.xlu0 %566
  %v569 = vmul.f32 %v552, %v567
  %571 = vrot.lane.b32.xlu0 %v569, 32
  %v572 = vpop.permute.xlu0 %571
  %574 = vrot.lane.b32.xlu0 %v543, 64
  %v575 = vpop.permute.xlu0 %574
  %v577 = vsel %vm262, %v572, %v575
  %v578 = vld [vmem:[%s5] sm:$0xff]
  %v579 = vld [vmem:[%s5 + $0x8] sm:$0xff]
  %v580 = vld [vmem:[%s5 + $0x10] sm:$0xff]
  %v581 = vld [vmem:[%s5 + $0x18] sm:$0xff]
  %v582 = vld [vmem:[%s5 + $0x20] sm:$0xff]
  %v583 = vld [vmem:[%s5 + $0x28] sm:$0xff]
  %v584 = vld [vmem:[%s5 + $0x30] sm:$0xff]
  %v585 = vld [vmem:[%s5 + $0x38] sm:$0xff]
  %v586 = vld [vmem:[%s5 + $0x40] sm:$0xff]
  %v587 = vld [vmem:[%s5 + $0x48] sm:$0xff]
  %v588 = vld [vmem:[%s5 + $0x50] sm:$0xff]
  %v589 = vld [vmem:[%s5 + $0x58] sm:$0xff]
  %v590 = vld [vmem:[%s5 + $0x60] sm:$0xff]
  %v591 = vld [vmem:[%s5 + $0x68] sm:$0xff]
  %v592 = vld [vmem:[%s5 + $0x70] sm:$0xff]
  %v593 = vld [vmem:[%s5 + $0x78] sm:$0xff]
  %v595 = vsel %vm362, %v577, 0
  %597 = vmatpush.msra.mxu0 0.0
  %598 = vmatpush.msra.mxu0 0.0
  %599 = vmatpush.msra.mxu0 0.0
  %600 = vmatpush.msra.mxu0 0.0
  %601 = vmatpush.msra.mxu0 0.0
  %602 = vmatpush.msra.mxu0 0.0
  %603 = vmatpush.msra.mxu0 0.0
  %604 = vmatpush.msra.mxu0 0.0
  %605 = vmatpush.msra.mxu0 %v592
  %606 = vmatpush.msra.mxu0 %v590
  %607 = vmatpush.msra.mxu0 %v588
  %608 = vmatpush.msra.mxu0 %v586
  %609 = vmatpush.msra.mxu0 %v584
  %610 = vmatpush.msra.mxu0 %v582
  %611 = vmatpush.msra.mxu0 %v580
  %612 = vmatpush.msra.mxu0 %v578
  %613 = vmatmul.f32.gmra.mxu0 %v595
  %v614 = vpop.f32.mrf.mxu0
  %v615 = vadd.f32 0.0, %v614
  %616 = vdwg.mxu0
  %617 = vmatpush.msra.mxu0 0.0
  %618 = vmatpush.msra.mxu0 0.0
  %619 = vmatpush.msra.mxu0 0.0
  %620 = vmatpush.msra.mxu0 0.0
  %621 = vmatpush.msra.mxu0 0.0
  %622 = vmatpush.msra.mxu0 0.0
  %623 = vmatpush.msra.mxu0 0.0
  %624 = vmatpush.msra.mxu0 0.0
  %625 = vmatpush.msra.mxu0 %v593
  %626 = vmatpush.msra.mxu0 %v591
  %627 = vmatpush.msra.mxu0 %v589
  %628 = vmatpush.msra.mxu0 %v587
  %629 = vmatpush.msra.mxu0 %v585
  %630 = vmatpush.msra.mxu0 %v583
  %631 = vmatpush.msra.mxu0 %v581
  %632 = vmatpush.msra.mxu0 %v579
  %633 = vmatmul.f32.gmra.mxu0 %v595
  %v634 = vpop.f32.mrf.mxu0
  %v635 = vadd.f32 0.0, %v634
  %636 = vdwg.mxu0
  %v637 = vadd.f32 %v635, %v407
  %v638 = vtanh.pop %v637
  %v639 = vadd.f32 %v638, 1.0
  %v640 = vmul.f32 %v639, 0.5
  %v641 = vmul.f32 %v640, %v537
  %643 = vrot.lane.b32.xlu0 %v638, 64
  %v644 = vpop.permute.xlu0 %643
  %v646 = vmul.f32 %v640, %v644
  %648 = vrot.lane.b32.xlu0 %v646, 32
  %v649 = vpop.permute.xlu0 %648
  %v651 = vadd.f32 %v641, %v649
  %v652 = vtanh.pop %v651
  %654 = vrot.lane.b32.xlu0 %v652, 64
  %v655 = vpop.permute.xlu0 %654
  %v657 = vmul.f32 %v640, %v655
  %659 = vrot.lane.b32.xlu0 %v657, 32
  %v660 = vpop.permute.xlu0 %659
  %662 = vst.msk [vmem:[#allocation2 + $0x10] sm:$0xff] %vm262, %v660
  %v663 = vadd.f32 %v306, %v615
  %v664 = vtanh.pop %v663
  %v665 = vadd.f32 %v664, 1.0
  %v666 = vmul.f32 %v665, 0.5
  %v667 = vmul.f32 %v666, %v563
  %669 = vrot.lane.b32.xlu0 %v664, 64
  %v670 = vpop.permute.xlu0 %669
  %v672 = vmul.f32 %v666, %v670
  %674 = vrot.lane.b32.xlu0 %v672, 32
  %v675 = vpop.permute.xlu0 %674
  %v677 = vadd.f32 %v667, %v675
  %v678 = vtanh.pop %v677
  %680 = vrot.lane.b32.xlu0 %v678, 64
  %v681 = vpop.permute.xlu0 %680
  %v683 = vmul.f32 %v666, %v681
  %685 = vrot.lane.b32.xlu0 %v683, 32
  %v686 = vpop.permute.xlu0 %685
  %688 = vrot.lane.b32.xlu0 %v657, 64
  %v689 = vpop.permute.xlu0 %688
  %v691 = vsel %vm262, %v686, %v689
  %v692 = vld [vmem:[%s5] sm:$0xff]
  %v693 = vld [vmem:[%s5 + $0x8] sm:$0xff]
  %v694 = vld [vmem:[%s5 + $0x10] sm:$0xff]
  %v695 = vld [vmem:[%s5 + $0x18] sm:$0xff]
  %v696 = vld [vmem:[%s5 + $0x20] sm:$0xff]
  %v697 = vld [vmem:[%s5 + $0x28] sm:$0xff]
  %v698 = vld [vmem:[%s5 + $0x30] sm:$0xff]
  %v699 = vld [vmem:[%s5 + $0x38] sm:$0xff]
  %v700 = vld [vmem:[%s5 + $0x40] sm:$0xff]
  %v701 = vld [vmem:[%s5 + $0x48] sm:$0xff]
  %v702 = vld [vmem:[%s5 + $0x50] sm:$0xff]
  %v703 = vld [vmem:[%s5 + $0x58] sm:$0xff]
  %v704 = vld [vmem:[%s5 + $0x60] sm:$0xff]
  %v705 = vld [vmem:[%s5 + $0x68] sm:$0xff]
  %v706 = vld [vmem:[%s5 + $0x70] sm:$0xff]
  %v707 = vld [vmem:[%s5 + $0x78] sm:$0xff]
  %v709 = vsel %vm362, %v691, 0
  %711 = vmatpush.msra.mxu0 0.0
  %712 = vmatpush.msra.mxu0 0.0
  %713 = vmatpush.msra.mxu0 0.0
  %714 = vmatpush.msra.mxu0 0.0
  %715 = vmatpush.msra.mxu0 0.0
  %716 = vmatpush.msra.mxu0 0.0
  %717 = vmatpush.msra.mxu0 0.0
  %718 = vmatpush.msra.mxu0 0.0
  %719 = vmatpush.msra.mxu0 %v706
  %720 = vmatpush.msra.mxu0 %v704
  %721 = vmatpush.msra.mxu0 %v702
  %722 = vmatpush.msra.mxu0 %v700
  %723 = vmatpush.msra.mxu0 %v698
  %724 = vmatpush.msra.mxu0 %v696
  %725 = vmatpush.msra.mxu0 %v694
  %726 = vmatpush.msra.mxu0 %v692
  %727 = vmatmul.f32.gmra.mxu0 %v709
  %v728 = vpop.f32.mrf.mxu0
  %v729 = vadd.f32 0.0, %v728
  %730 = vdwg.mxu0
  %731 = vmatpush.msra.mxu0 0.0
  %732 = vmatpush.msra.mxu0 0.0
  %733 = vmatpush.msra.mxu0 0.0
  %734 = vmatpush.msra.mxu0 0.0
  %735 = vmatpush.msra.mxu0 0.0
  %736 = vmatpush.msra.mxu0 0.0
  %737 = vmatpush.msra.mxu0 0.0
  %738 = vmatpush.msra.mxu0 0.0
  %739 = vmatpush.msra.mxu0 %v707
  %740 = vmatpush.msra.mxu0 %v705
  %741 = vmatpush.msra.mxu0 %v703
  %742 = vmatpush.msra.mxu0 %v701
  %743 = vmatpush.msra.mxu0 %v699
  %744 = vmatpush.msra.mxu0 %v697
  %745 = vmatpush.msra.mxu0 %v695
  %746 = vmatpush.msra.mxu0 %v693
  %747 = vmatmul.f32.gmra.mxu0 %v709
  %v748 = vpop.f32.mrf.mxu0
  %v749 = vadd.f32 0.0, %v748
  %750 = vdwg.mxu0
  %v751 = vadd.f32 %v749, %v407
  %v752 = vtanh.pop %v751
  %v753 = vadd.f32 %v752, 1.0
  %v754 = vmul.f32 %v753, 0.5
  %v755 = vmul.f32 %v754, %v651
  %757 = vrot.lane.b32.xlu0 %v752, 64
  %v758 = vpop.permute.xlu0 %757
  %v760 = vmul.f32 %v754, %v758
  %762 = vrot.lane.b32.xlu0 %v760, 32
  %v763 = vpop.permute.xlu0 %762
  %v765 = vadd.f32 %v755, %v763
  %v766 = vtanh.pop %v765
  %768 = vrot.lane.b32.xlu0 %v766, 64
  %v769 = vpop.permute.xlu0 %768
  %v771 = vmul.f32 %v754, %v769
  %773 = vrot.lane.b32.xlu0 %v771, 32
  %v774 = vpop.permute.xlu0 %773
  %776 = vst.msk [vmem:[#allocation2 + $0x18] sm:$0xff] %vm262, %v774
  %v777 = vadd.f32 %v309, %v729
  %v778 = vtanh.pop %v777
  %v779 = vadd.f32 %v778, 1.0
  %v780 = vmul.f32 %v779, 0.5
  %v781 = vmul.f32 %v780, %v677
  %783 = vrot.lane.b32.xlu0 %v778, 64
  %v784 = vpop.permute.xlu0 %783
  %v786 = vmul.f32 %v780, %v784
  %788 = vrot.lane.b32.xlu0 %v786, 32
  %v789 = vpop.permute.xlu0 %788
  %v791 = vadd.f32 %v781, %v789
  %v792 = vtanh.pop %v791
  %794 = vrot.lane.b32.xlu0 %v792, 64
  %v795 = vpop.permute.xlu0 %794
  %v797 = vmul.f32 %v780, %v795
  %799 = vrot.lane.b32.xlu0 %v797, 32
  %v800 = vpop.permute.xlu0 %799
  %802 = vrot.lane.b32.xlu0 %v771, 64
  %v803 = vpop.permute.xlu0 %802
  %v805 = vsel %vm262, %v800, %v803
  %v806 = vld [vmem:[%s5] sm:$0xff]
  %v807 = vld [vmem:[%s5 + $0x8] sm:$0xff]
  %v808 = vld [vmem:[%s5 + $0x10] sm:$0xff]
  %v809 = vld [vmem:[%s5 + $0x18] sm:$0xff]
  %v810 = vld [vmem:[%s5 + $0x20] sm:$0xff]
  %v811 = vld [vmem:[%s5 + $0x28] sm:$0xff]
  %v812 = vld [vmem:[%s5 + $0x30] sm:$0xff]
  %v813 = vld [vmem:[%s5 + $0x38] sm:$0xff]
  %v814 = vld [vmem:[%s5 + $0x40] sm:$0xff]
  %v815 = vld [vmem:[%s5 + $0x48] sm:$0xff]
  %v816 = vld [vmem:[%s5 + $0x50] sm:$0xff]
  %v817 = vld [vmem:[%s5 + $0x58] sm:$0xff]
  %v818 = vld [vmem:[%s5 + $0x60] sm:$0xff]
  %v819 = vld [vmem:[%s5 + $0x68] sm:$0xff]
  %v820 = vld [vmem:[%s5 + $0x70] sm:$0xff]
  %v821 = vld [vmem:[%s5 + $0x78] sm:$0xff]
  %v823 = vsel %vm362, %v805, 0
  %825 = vmatpush.msra.mxu0 0.0
  %826 = vmatpush.msra.mxu0 0.0
  %827 = vmatpush.msra.mxu0 0.0
  %828 = vmatpush.msra.mxu0 0.0
  %829 = vmatpush.msra.mxu0 0.0
  %830 = vmatpush.msra.mxu0 0.0
  %831 = vmatpush.msra.mxu0 0.0
  %832 = vmatpush.msra.mxu0 0.0
  %833 = vmatpush.msra.mxu0 %v820
  %834 = vmatpush.msra.mxu0 %v818
  %835 = vmatpush.msra.mxu0 %v816
  %836 = vmatpush.msra.mxu0 %v814
  %837 = vmatpush.msra.mxu0 %v812
  %838 = vmatpush.msra.mxu0 %v810
  %839 = vmatpush.msra.mxu0 %v808
  %840 = vmatpush.msra.mxu0 %v806
  %841 = vmatmul.f32.gmra.mxu0 %v823
  %v842 = vpop.f32.mrf.mxu0
  %v843 = vadd.f32 0.0, %v842
  %844 = vdwg.mxu0
  %845 = vmatpush.msra.mxu0 0.0
  %846 = vmatpush.msra.mxu0 0.0
  %847 = vmatpush.msra.mxu0 0.0
  %848 = vmatpush.msra.mxu0 0.0
  %849 = vmatpush.msra.mxu0 0.0
  %850 = vmatpush.msra.mxu0 0.0
  %851 = vmatpush.msra.mxu0 0.0
  %852 = vmatpush.msra.mxu0 0.0
  %853 = vmatpush.msra.mxu0 %v821
  %854 = vmatpush.msra.mxu0 %v819
  %855 = vmatpush.msra.mxu0 %v817
  %856 = vmatpush.msra.mxu0 %v815
  %857 = vmatpush.msra.mxu0 %v813
  %858 = vmatpush.msra.mxu0 %v811
  %859 = vmatpush.msra.mxu0 %v809
  %860 = vmatpush.msra.mxu0 %v807
  %861 = vmatmul.f32.gmra.mxu0 %v823
  %v862 = vpop.f32.mrf.mxu0
  %v863 = vadd.f32 0.0, %v862
  %864 = vdwg.mxu0
  %v865 = vadd.f32 %v863, %v407
  %v866 = vtanh.pop %v865
  %v867 = vadd.f32 %v866, 1.0
  %v868 = vmul.f32 %v867, 0.5
  %v869 = vmul.f32 %v868, %v765
  %871 = vrot.lane.b32.xlu0 %v866, 64
  %v872 = vpop.permute.xlu0 %871
  %v874 = vmul.f32 %v868, %v872
  %876 = vrot.lane.b32.xlu0 %v874, 32
  %v877 = vpop.permute.xlu0 %876
  %v879 = vadd.f32 %v869, %v877
  %v880 = vtanh.pop %v879
  %882 = vrot.lane.b32.xlu0 %v880, 64
  %v883 = vpop.permute.xlu0 %882
  %v885 = vmul.f32 %v868, %v883
  %887 = vrot.lane.b32.xlu0 %v885, 32
  %v888 = vpop.permute.xlu0 %887
  %890 = vst.msk [vmem:[#allocation2 + $0x20] sm:$0xff] %vm262, %v888
  %v891 = vadd.f32 %v312, %v843
  %v892 = vtanh.pop %v891
  %v893 = vadd.f32 %v892, 1.0
  %v894 = vmul.f32 %v893, 0.5
  %v895 = vmul.f32 %v894, %v791
  %897 = vrot.lane.b32.xlu0 %v892, 64
  %v898 = vpop.permute.xlu0 %897
  %v900 = vmul.f32 %v894, %v898
  %902 = vrot.lane.b32.xlu0 %v900, 32
  %v903 = vpop.permute.xlu0 %902
  %v905 = vadd.f32 %v895, %v903
  %v906 = vtanh.pop %v905
  %908 = vrot.lane.b32.xlu0 %v906, 64
  %v909 = vpop.permute.xlu0 %908
  %v911 = vmul.f32 %v894, %v909
  %913 = vrot.lane.b32.xlu0 %v911, 32
  %v914 = vpop.permute.xlu0 %913
  %916 = vrot.lane.b32.xlu0 %v885, 64
  %v917 = vpop.permute.xlu0 %916
  %v919 = vsel %vm262, %v914, %v917
  %v920 = vld [vmem:[%s5] sm:$0xff]
  %v921 = vld [vmem:[%s5 + $0x8] sm:$0xff]
  %v922 = vld [vmem:[%s5 + $0x10] sm:$0xff]
  %v923 = vld [vmem:[%s5 + $0x18] sm:$0xff]
  %v924 = vld [vmem:[%s5 + $0x20] sm:$0xff]
  %v925 = vld [vmem:[%s5 + $0x28] sm:$0xff]
  %v926 = vld [vmem:[%s5 + $0x30] sm:$0xff]
  %v927 = vld [vmem:[%s5 + $0x38] sm:$0xff]
  %v928 = vld [vmem:[%s5 + $0x40] sm:$0xff]
  %v929 = vld [vmem:[%s5 + $0x48] sm:$0xff]
  %v930 = vld [vmem:[%s5 + $0x50] sm:$0xff]
  %v931 = vld [vmem:[%s5 + $0x58] sm:$0xff]
  %v932 = vld [vmem:[%s5 + $0x60] sm:$0xff]
  %v933 = vld [vmem:[%s5 + $0x68] sm:$0xff]
  %v934 = vld [vmem:[%s5 + $0x70] sm:$0xff]
  %v935 = vld [vmem:[%s5 + $0x78] sm:$0xff]
  %v937 = vsel %vm362, %v919, 0
  %939 = vmatpush.msra.mxu0 0.0
  %940 = vmatpush.msra.mxu0 0.0
  %941 = vmatpush.msra.mxu0 0.0
  %942 = vmatpush.msra.mxu0 0.0
  %943 = vmatpush.msra.mxu0 0.0
  %944 = vmatpush.msra.mxu0 0.0
  %945 = vmatpush.msra.mxu0 0.0
  %946 = vmatpush.msra.mxu0 0.0
  %947 = vmatpush.msra.mxu0 %v934
  %948 = vmatpush.msra.mxu0 %v932
  %949 = vmatpush.msra.mxu0 %v930
  %950 = vmatpush.msra.mxu0 %v928
  %951 = vmatpush.msra.mxu0 %v926
  %952 = vmatpush.msra.mxu0 %v924
  %953 = vmatpush.msra.mxu0 %v922
  %954 = vmatpush.msra.mxu0 %v920
  %955 = vmatmul.f32.gmra.mxu0 %v937
  %v956 = vpop.f32.mrf.mxu0
  %v957 = vadd.f32 0.0, %v956
  %958 = vdwg.mxu0
  %959 = vmatpush.msra.mxu0 0.0
  %960 = vmatpush.msra.mxu0 0.0
  %961 = vmatpush.msra.mxu0 0.0
  %962 = vmatpush.msra.mxu0 0.0
  %963 = vmatpush.msra.mxu0 0.0
  %964 = vmatpush.msra.mxu0 0.0
  %965 = vmatpush.msra.mxu0 0.0
  %966 = vmatpush.msra.mxu0 0.0
  %967 = vmatpush.msra.mxu0 %v935
  %968 = vmatpush.msra.mxu0 %v933
  %969 = vmatpush.msra.mxu0 %v931
  %970 = vmatpush.msra.mxu0 %v929
  %971 = vmatpush.msra.mxu0 %v927
  %972 = vmatpush.msra.mxu0 %v925
  %973 = vmatpush.msra.mxu0 %v923
  %974 = vmatpush.msra.mxu0 %v921
  %975 = vmatmul.f32.gmra.mxu0 %v937
  %v976 = vpop.f32.mrf.mxu0
  %v977 = vadd.f32 0.0, %v976
  %978 = vdwg.mxu0
  %v979 = vadd.f32 %v977, %v407
  %v980 = vtanh.pop %v979
  %v981 = vadd.f32 %v980, 1.0
  %v982 = vmul.f32 %v981, 0.5
  %v983 = vmul.f32 %v982, %v879
  %985 = vrot.lane.b32.xlu0 %v980, 64
  %v986 = vpop.permute.xlu0 %985
  %v988 = vmul.f32 %v982, %v986
  %990 = vrot.lane.b32.xlu0 %v988, 32
  %v991 = vpop.permute.xlu0 %990
  %v993 = vadd.f32 %v983, %v991
  %v994 = vtanh.pop %v993
  %996 = vrot.lane.b32.xlu0 %v994, 64
  %v997 = vpop.permute.xlu0 %996
  %v999 = vmul.f32 %v982, %v997
  %1001 = vrot.lane.b32.xlu0 %v999, 32
  %v1002 = vpop.permute.xlu0 %1001
  %1004 = vst.msk [vmem:[#allocation2 + $0x28] sm:$0xff] %vm262, %v1002
  %v1005 = vadd.f32 %v315, %v957
  %v1006 = vtanh.pop %v1005
  %v1007 = vadd.f32 %v1006, 1.0
  %v1008 = vmul.f32 %v1007, 0.5
  %v1009 = vmul.f32 %v1008, %v905
  %1011 = vrot.lane.b32.xlu0 %v1006, 64
  %v1012 = vpop.permute.xlu0 %1011
  %v1014 = vmul.f32 %v1008, %v1012
  %1016 = vrot.lane.b32.xlu0 %v1014, 32
  %v1017 = vpop.permute.xlu0 %1016
  %v1019 = vadd.f32 %v1009, %v1017
  %v1020 = vtanh.pop %v1019
  %1022 = vrot.lane.b32.xlu0 %v1020, 64
  %v1023 = vpop.permute.xlu0 %1022
  %v1025 = vmul.f32 %v1008, %v1023
  %1027 = vrot.lane.b32.xlu0 %v1025, 32
  %v1028 = vpop.permute.xlu0 %1027
  %1030 = vrot.lane.b32.xlu0 %v999, 64
  %v1031 = vpop.permute.xlu0 %1030
  %v1033 = vsel %vm262, %v1028, %v1031
  %v1034 = vld [vmem:[%s5] sm:$0xff]
  %v1035 = vld [vmem:[%s5 + $0x8] sm:$0xff]
  %v1036 = vld [vmem:[%s5 + $0x10] sm:$0xff]
  %v1037 = vld [vmem:[%s5 + $0x18] sm:$0xff]
  %v1038 = vld [vmem:[%s5 + $0x20] sm:$0xff]
  %v1039 = vld [vmem:[%s5 + $0x28] sm:$0xff]
  %v1040 = vld [vmem:[%s5 + $0x30] sm:$0xff]
  %v1041 = vld [vmem:[%s5 + $0x38] sm:$0xff]
  %v1042 = vld [vmem:[%s5 + $0x40] sm:$0xff]
  %v1043 = vld [vmem:[%s5 + $0x48] sm:$0xff]
  %v1044 = vld [vmem:[%s5 + $0x50] sm:$0xff]
  %v1045 = vld [vmem:[%s5 + $0x58] sm:$0xff]
  %v1046 = vld [vmem:[%s5 + $0x60] sm:$0xff]
  %v1047 = vld [vmem:[%s5 + $0x68] sm:$0xff]
  %v1048 = vld [vmem:[%s5 + $0x70] sm:$0xff]
  %v1049 = vld [vmem:[%s5 + $0x78] sm:$0xff]
  %v1051 = vsel %vm362, %v1033, 0
  %1053 = vmatpush.msra.mxu0 0.0
  %1054 = vmatpush.msra.mxu0 0.0
  %1055 = vmatpush.msra.mxu0 0.0
  %1056 = vmatpush.msra.mxu0 0.0
  %1057 = vmatpush.msra.mxu0 0.0
  %1058 = vmatpush.msra.mxu0 0.0
  %1059 = vmatpush.msra.mxu0 0.0
  %1060 = vmatpush.msra.mxu0 0.0
  %1061 = vmatpush.msra.mxu0 %v1048
  %1062 = vmatpush.msra.mxu0 %v1046
  %1063 = vmatpush.msra.mxu0 %v1044
  %1064 = vmatpush.msra.mxu0 %v1042
  %1065 = vmatpush.msra.mxu0 %v1040
  %1066 = vmatpush.msra.mxu0 %v1038
  %1067 = vmatpush.msra.mxu0 %v1036
  %1068 = vmatpush.msra.mxu0 %v1034
  %1069 = vmatmul.f32.gmra.mxu0 %v1051
  %v1070 = vpop.f32.mrf.mxu0
  %v1071 = vadd.f32 0.0, %v1070
  %1072 = vdwg.mxu0
  %1073 = vmatpush.msra.mxu0 0.0
  %1074 = vmatpush.msra.mxu0 0.0
  %1075 = vmatpush.msra.mxu0 0.0
  %1076 = vmatpush.msra.mxu0 0.0
  %1077 = vmatpush.msra.mxu0 0.0
  %1078 = vmatpush.msra.mxu0 0.0
  %1079 = vmatpush.msra.mxu0 0.0
  %1080 = vmatpush.msra.mxu0 0.0
  %1081 = vmatpush.msra.mxu0 %v1049
  %1082 = vmatpush.msra.mxu0 %v1047
  %1083 = vmatpush.msra.mxu0 %v1045
  %1084 = vmatpush.msra.mxu0 %v1043
  %1085 = vmatpush.msra.mxu0 %v1041
  %1086 = vmatpush.msra.mxu0 %v1039
  %1087 = vmatpush.msra.mxu0 %v1037
  %1088 = vmatpush.msra.mxu0 %v1035
  %1089 = vmatmul.f32.gmra.mxu0 %v1051
  %v1090 = vpop.f32.mrf.mxu0
  %v1091 = vadd.f32 0.0, %v1090
  %1092 = vdwg.mxu0
  %v1093 = vadd.f32 %v1091, %v407
  %v1094 = vtanh.pop %v1093
  %v1095 = vadd.f32 %v1094, 1.0
  %v1096 = vmul.f32 %v1095, 0.5
  %v1097 = vmul.f32 %v1096, %v993
  %1099 = vrot.lane.b32.xlu0 %v1094, 64
  %v1100 = vpop.permute.xlu0 %1099
  %v1102 = vmul.f32 %v1096, %v1100
  %1104 = vrot.lane.b32.xlu0 %v1102, 32
  %v1105 = vpop.permute.xlu0 %1104
  %v1107 = vadd.f32 %v1097, %v1105
  %v1108 = vtanh.pop %v1107
  %1110 = vrot.lane.b32.xlu0 %v1108, 64
  %v1111 = vpop.permute.xlu0 %1110
  %v1113 = vmul.f32 %v1096, %v1111
  %1115 = vrot.lane.b32.xlu0 %v1113, 32
  %v1116 = vpop.permute.xlu0 %1115
  %1118 = vst.msk [vmem:[#allocation2 + $0x30] sm:$0xff] %vm262, %v1116
  %v1119 = vadd.f32 %v318, %v1071
  %v1120 = vtanh.pop %v1119
  %v1121 = vadd.f32 %v1120, 1.0
  %v1122 = vmul.f32 %v1121, 0.5
  %v1123 = vmul.f32 %v1122, %v1019
  %1125 = vrot.lane.b32.xlu0 %v1120, 64
  %v1126 = vpop.permute.xlu0 %1125
  %v1128 = vmul.f32 %v1122, %v1126
  %1130 = vrot.lane.b32.xlu0 %v1128, 32
  %v1131 = vpop.permute.xlu0 %1130
  %v1133 = vadd.f32 %v1123, %v1131
  %v1134 = vtanh.pop %v1133
  %1136 = vrot.lane.b32.xlu0 %v1134, 64
  %v1137 = vpop.permute.xlu0 %1136
  %v1139 = vmul.f32 %v1122, %v1137
  %1141 = vrot.lane.b32.xlu0 %v1139, 32
  %v1142 = vpop.permute.xlu0 %1141
  %1144 = vrot.lane.b32.xlu0 %v1113, 64
  %v1145 = vpop.permute.xlu0 %1144
  %v1147 = vsel %vm262, %v1142, %v1145
  %v1148 = vld [vmem:[%s5 + $0x8] sm:$0xff]
  %v1149 = vld [vmem:[%s5 + $0x18] sm:$0xff]
  %v1150 = vld [vmem:[%s5 + $0x28] sm:$0xff]
  %v1151 = vld [vmem:[%s5 + $0x38] sm:$0xff]
  %v1152 = vld [vmem:[%s5 + $0x48] sm:$0xff]
  %v1153 = vld [vmem:[%s5 + $0x58] sm:$0xff]
  %v1154 = vld [vmem:[%s5 + $0x68] sm:$0xff]
  %v1155 = vld [vmem:[%s5 + $0x78] sm:$0xff]
  %v1157 = vsel %vm362, %v1147, 0
  %1159 = vmatpush.msra.mxu0 0.0
  %1160 = vmatpush.msra.mxu0 0.0
  %1161 = vmatpush.msra.mxu0 0.0
  %1162 = vmatpush.msra.mxu0 0.0
  %1163 = vmatpush.msra.mxu0 0.0
  %1164 = vmatpush.msra.mxu0 0.0
  %1165 = vmatpush.msra.mxu0 0.0
  %1166 = vmatpush.msra.mxu0 0.0
  %1167 = vmatpush.msra.mxu0 %v1155
  %1168 = vmatpush.msra.mxu0 %v1154
  %1169 = vmatpush.msra.mxu0 %v1153
  %1170 = vmatpush.msra.mxu0 %v1152
  %1171 = vmatpush.msra.mxu0 %v1151
  %1172 = vmatpush.msra.mxu0 %v1150
  %1173 = vmatpush.msra.mxu0 %v1149
  %1174 = vmatpush.msra.mxu0 %v1148
  %1175 = vmatmul.f32.gmra.mxu0 %v1157
  %v1176 = vpop.f32.mrf.mxu0
  %v1177 = vadd.f32 0.0, %v1176
  %1178 = vdwg.mxu0
  %v1179 = vadd.f32 %v1177, %v407
  %v1180 = vtanh.pop %v1179
  %v1181 = vadd.f32 %v1180, 1.0
  %v1182 = vmul.f32 %v1181, 0.5
  %v1183 = vmul.f32 %v1182, %v1107
  %1185 = vrot.lane.b32.xlu0 %v1180, 64
  %v1186 = vpop.permute.xlu0 %1185
  %v1188 = vmul.f32 %v1182, %v1186
  %1190 = vrot.lane.b32.xlu0 %v1188, 32
  %v1191 = vpop.permute.xlu0 %1190
  %v1193 = vadd.f32 %v1183, %v1191
  %v1194 = vtanh.pop %v1193
  %1196 = vrot.lane.b32.xlu0 %v1194, 64
  %v1197 = vpop.permute.xlu0 %1196
  %v1199 = vmul.f32 %v1182, %v1197
  %1201 = vrot.lane.b32.xlu0 %v1199, 32
  %v1202 = vpop.permute.xlu0 %1201
  %1204 = vst.msk [vmem:[#allocation2 + $0x38] sm:$0xff] %vm262, %v1202
  %v1205 = vld [vmem:[#allocation2] sm:$0xff]
  %v1206 = vld [vmem:[#allocation2 + $0x8] sm:$0xff]
  %v1207 = vld [vmem:[#allocation2 + $0x10] sm:$0xff]
  %v1208 = vld [vmem:[#allocation2 + $0x18] sm:$0xff]
  %v1209 = vld [vmem:[#allocation2 + $0x20] sm:$0xff]
  %v1210 = vld [vmem:[#allocation2 + $0x28] sm:$0xff]
  %v1211 = vld [vmem:[#allocation2 + $0x30] sm:$0xff]
  %v1212 = vld [vmem:[#allocation2 + $0x38] sm:$0xff]
  %v1213 = vld [vmem:[%s8] sm:$0xff]
  %v1214 = vld [vmem:[%s8 + $0x8] sm:$0xff]
  %v1215 = vld [vmem:[%s8 + $0x10] sm:$0xff]
  %v1216 = vld [vmem:[%s8 + $0x18] sm:$0xff]
  %v1217 = vld [vmem:[%s9] sm:$0x1]
  %v1219 = vperm.slane %v1217, 0
  %v1222 = vsel %vm262, %v1205, 0
  %v1225 = vsel %vm262, %v1206, 0
  %v1228 = vsel %vm262, %v1207, 0
  %v1231 = vsel %vm262, %v1208, 0
  %v1234 = vsel %vm262, %v1209, 0
  %v1237 = vsel %vm262, %v1210, 0
  %v1240 = vsel %vm262, %v1211, 0
  %v1243 = vsel %vm262, %v1212, 0
  %1245 = vmatpush.msra.mxu0 0.0
  %1246 = vmatpush.msra.mxu0 0.0
  %1247 = vmatpush.msra.mxu0 0.0
  %1248 = vmatpush.msra.mxu0 0.0
  %1249 = vmatpush.msra.mxu0 0.0
  %1250 = vmatpush.msra.mxu0 0.0
  %1251 = vmatpush.msra.mxu0 0.0
  %1252 = vmatpush.msra.mxu0 0.0
  %1253 = vmatpush.msra.mxu0 0.0
  %1254 = vmatpush.msra.mxu0 0.0
  %1255 = vmatpush.msra.mxu0 0.0
  %1256 = vmatpush.msra.mxu0 0.0
  %1257 = vmatpush.msra.mxu0 %v1216
  %1258 = vmatpush.msra.mxu0 %v1215
  %1259 = vmatpush.msra.mxu0 %v1214
  %1260 = vmatpush.msra.mxu0 %v1213
  %1261 = vmatmul.f32.gmra.mxu0 %v1222
  %v1262 = vpop.f32.mrf.mxu0
  %v1263 = vadd.f32 %v1219, %v1262
  %1264 = vmatmul.f32.gmra.mxu0 %v1225
  %v1265 = vpop.f32.mrf.mxu0
  %v1266 = vadd.f32 %v1219, %v1265
  %1267 = vmatmul.f32.gmra.mxu0 %v1228
  %v1268 = vpop.f32.mrf.mxu0
  %v1269 = vadd.f32 %v1219, %v1268
  %1270 = vmatmul.f32.gmra.mxu0 %v1231
  %v1271 = vpop.f32.mrf.mxu0
  %v1272 = vadd.f32 %v1219, %v1271
  %1273 = vmatmul.f32.gmra.mxu0 %v1234
  %v1274 = vpop.f32.mrf.mxu0
  %v1275 = vadd.f32 %v1219, %v1274
  %1276 = vmatmul.f32.gmra.mxu0 %v1237
  %v1277 = vpop.f32.mrf.mxu0
  %v1278 = vadd.f32 %v1219, %v1277
  %1279 = vmatmul.f32.gmra.mxu0 %v1240
  %v1280 = vpop.f32.mrf.mxu0
  %v1281 = vadd.f32 %v1219, %v1280
  %1282 = vmatmul.f32.gmra.mxu0 %v1243
  %v1283 = vpop.f32.mrf.mxu0
  %v1284 = vadd.f32 %v1219, %v1283
  %1285 = vdwg.mxu0
  %1286 = vmax.xlane.f32.xlu0 %v1263
  %v1287 = vpop.xlane.xlu0 %1286
  %1288 = vmax.xlane.f32.xlu0 %v1266
  %v1289 = vpop.xlane.xlu0 %1288
  %1290 = vmax.xlane.f32.xlu0 %v1269
  %v1291 = vpop.xlane.xlu0 %1290
  %1292 = vmax.xlane.f32.xlu0 %v1272
  %v1293 = vpop.xlane.xlu0 %1292
  %1294 = vmax.xlane.f32.xlu0 %v1275
  %v1295 = vpop.xlane.xlu0 %1294
  %1296 = vmax.xlane.f32.xlu0 %v1278
  %v1297 = vpop.xlane.xlu0 %1296
  %1298 = vmax.xlane.f32.xlu0 %v1281
  %v1299 = vpop.xlane.xlu0 %1298
  %1300 = vmax.xlane.f32.xlu0 %v1284
  %v1301 = vpop.xlane.xlu0 %1300
  %v1302 = vsub.f32 %v1263, %v1287
  %v1303 = vsub.f32 %v1266, %v1289
  %v1304 = vsub.f32 %v1269, %v1291
  %v1305 = vsub.f32 %v1272, %v1293
  %v1306 = vsub.f32 %v1275, %v1295
  %v1307 = vsub.f32 %v1278, %v1297
  %v1308 = vsub.f32 %v1281, %v1299
  %v1309 = vsub.f32 %v1284, %v1301
  %v1310 = vmul.f32 %v1302, 1.442695
  %v1311 = vpow.pop %v1310
  %v1312 = vmul.f32 %v1303, 1.442695
  %v1313 = vpow.pop %v1312
  %v1314 = vmul.f32 %v1304, 1.442695
  %v1315 = vpow.pop %v1314
  %v1316 = vmul.f32 %v1305, 1.442695
  %v1317 = vpow.pop %v1316
  %v1318 = vmul.f32 %v1306, 1.442695
  %v1319 = vpow.pop %v1318
  %v1320 = vmul.f32 %v1307, 1.442695
  %v1321 = vpow.pop %v1320
  %v1322 = vmul.f32 %v1308, 1.442695
  %v1323 = vpow.pop %v1322
  %v1324 = vmul.f32 %v1309, 1.442695
  %v1325 = vpow.pop %v1324
  %1326 = vadd.xlane.f32.xlu0 %v1311
  %v1327 = vpop.xlane.xlu0 %1326
  %1328 = vadd.xlane.f32.xlu0 %v1313
  %v1329 = vpop.xlane.xlu0 %1328
  %1330 = vadd.xlane.f32.xlu0 %v1315
  %v1331 = vpop.xlane.xlu0 %1330
  %1332 = vadd.xlane.f32.xlu0 %v1317
  %v1333 = vpop.xlane.xlu0 %1332
  %1334 = vadd.xlane.f32.xlu0 %v1319
  %v1335 = vpop.xlane.xlu0 %1334
  %1336 = vadd.xlane.f32.xlu0 %v1321
  %v1337 = vpop.xlane.xlu0 %1336
  %1338 = vadd.xlane.f32.xlu0 %v1323
  %v1339 = vpop.xlane.xlu0 %1338
  %1340 = vadd.xlane.f32.xlu0 %v1325
  %v1341 = vpop.xlane.xlu0 %1340
  %v1342 = vlog2.pop %v1327
  %v1343 = vmul.f32 %v1342, 0.6931472
  %v1344 = vlog2.pop %v1329
  %v1345 = vmul.f32 %v1344, 0.6931472
  %v1346 = vlog2.pop %v1331
  %v1347 = vmul.f32 %v1346, 0.6931472
  %v1348 = vlog2.pop %v1333
  %v1349 = vmul.f32 %v1348, 0.6931472
  %v1350 = vlog2.pop %v1335
  %v1351 = vmul.f32 %v1350, 0.6931472
  %v1352 = vlog2.pop %v1337
  %v1353 = vmul.f32 %v1352, 0.6931472
  %v1354 = vlog2.pop %v1339
  %v1355 = vmul.f32 %v1354, 0.6931472
  %v1356 = vlog2.pop %v1341
  %v1357 = vmul.f32 %v1356, 0.6931472
  %v1358 = vsub.f32 %v1302, %v1343
  %v1359 = vsub.f32 %v1303, %v1345
  %v1360 = vsub.f32 %v1304, %v1347
  %v1361 = vsub.f32 %v1305, %v1349
  %v1362 = vsub.f32 %v1306, %v1351
  %v1363 = vsub.f32 %v1307, %v1353
  %v1364 = vsub.f32 %v1308, %v1355
  %v1365 = vsub.f32 %v1309, %v1357
  %1366 = vst [vmem:[%s10] sm:$0xff] %v1358
  %1367 = vst [vmem:[%s10 + $0x8] sm:$0xff] %v1359
  %1368 = vst [vmem:[%s10 + $0x10] sm:$0xff] %v1360
  %1369 = vst [vmem:[%s10 + $0x18] sm:$0xff] %v1361
  %1370 = vst [vmem:[%s10 + $0x20] sm:$0xff] %v1362
  %1371 = vst [vmem:[%s10 + $0x28] sm:$0xff] %v1363
  %1372 = vst [vmem:[%s10 + $0x30] sm:$0xff] %v1364
  %1373 = vst [vmem:[%s10 + $0x38] sm:$0xff] %v1365
  // Predicated region
  $region42: #{_forward_jit.1} parent=0 // pred_check
    _
  $region43: #{_forward_jit.1} parent=0 // pred_check_branch
    %1375 = sbr.rel (0) target = $region45
  $region44: #{_forward_jit.1} parent=0 // pred_region
    _
  $region45: #{_forward_jit.1} parent=0 // pred_fallthru
    _
  // Predicated region
  $region46: #{_forward_jit.1} parent=0 // pred_check
    _
  $region47: #{_forward_jit.1} parent=0 // pred_check_branch
    %1377 = sbr.rel (0) target = $region49
  $region48: #{_forward_jit.1} parent=0 // pred_region
    _
  $region49: #{_forward_jit.1} parent=0 // pred_fallthru
    _

</llo_original>
